<compile_context>
chip_gen: v7x
topology: tpu7x:2x2x1
jax: 0.10.0
libtpu: 0.0.40
codegen_flags: <defaults>
</compile_context>

<pallas_src>
from functools import partial

import jax
import jax.numpy as jnp
from jax.experimental import pallas as pl
from jax.experimental.pallas import tpu as pltpu


# ------------------------------------------------------------ fused kernel ---
def _fused_attention_kernel(x_ref, wqkv_ref, bqkv_ref, wproj_ref, bproj_ref,
                            o_ref, ctx_ref, *, num_heads, scale):
    """One batch element: QKV proj -> per-head softmax attention -> out proj."""
    _, n, c = x_ref.shape
    d = c // num_heads

    x = x_ref[0]                                                     # (N, C)

    # QKV projection: (N, C) @ (C, 3C) + bias  -> (N, 3C), f32 accumulation.
    qkv = (jnp.dot(x, wqkv_ref[...], preferred_element_type=jnp.float32)
           + bqkv_ref[...])                                          # (N, 3C)

    # Per-head attention; heads are static column slices of the qkv block.
    for h in range(num_heads):
        q = qkv[:, h * d:(h + 1) * d]                                # (N, D)
        k = qkv[:, c + h * d:c + (h + 1) * d]                        # (N, D)
        v = qkv[:, 2 * c + h * d:2 * c + (h + 1) * d]                # (N, D)

        # s = q @ k^T * scale  (contract on D; NT matmul on the MXU)
        s = jax.lax.dot_general(
            q, k, (((1,), (1,)), ((), ())),
            preferred_element_type=jnp.float32) * scale              # (N, N)

        m = jnp.max(s, axis=-1, keepdims=True)
        p = jnp.exp(s - m)
        denom = jnp.sum(p, axis=-1, keepdims=True)

        ctx_h = jnp.dot(p, v, preferred_element_type=jnp.float32) / denom
        ctx_ref[:, h * d:(h + 1) * d] = ctx_h                        # merge heads

    # Output projection on the merged context: (N, C) @ (C, C) + bias.
    out = (jnp.dot(ctx_ref[...], wproj_ref[...],
                   preferred_element_type=jnp.float32) + bproj_ref[...])
    o_ref[0] = out.astype(o_ref.dtype)


# ---------------------------------------------------------------- forward ----
def attention_forward(x, w_qkv, b_qkv, w_proj, b_proj, num_heads):
    """Faithful forward of the DeiT Attention module (dropout p=0 -> identity).

    x: (B, N, C); w_qkv: (3C, C); b_qkv: (3C,); w_proj: (C, C); b_proj: (C,).
    """
    b, n, c = x.shape
    d = c // num_heads
    scale = float(d) ** -0.5

    return pl.pallas_call(
        partial(_fused_attention_kernel, num_heads=num_heads, scale=scale),
        out_shape=jax.ShapeDtypeStruct((b, n, c), x.dtype),
        grid=(b,),
        in_specs=[
            pl.BlockSpec((1, n, c), lambda i: (i, 0, 0)),       # x[b]
            pl.BlockSpec((c, 3 * c), lambda i: (0, 0)),         # Wqkv^T (resident)
            pl.BlockSpec((1, 3 * c), lambda i: (0, 0)),         # b_qkv
            pl.BlockSpec((c, c), lambda i: (0, 0)),             # Wproj^T (resident)
            pl.BlockSpec((1, c), lambda i: (0, 0)),             # b_proj
        ],
        out_specs=pl.BlockSpec((1, n, c), lambda i: (i, 0, 0)),
        scratch_shapes=[pltpu.VMEM((n, c), jnp.float32)],       # merged-head ctx
        compiler_params=pltpu.CompilerParams(
            dimension_semantics=("parallel",)),
    )(x, w_qkv.T, b_qkv.reshape(1, 3 * c), w_proj.T, b_proj.reshape(1, c))


# -------------------------------------------------------------- reference ----
def attention_reference(x, w_qkv, b_qkv, w_proj, b_proj, num_heads):
    """Pure-JAX reference mirroring the PyTorch forward (f32-precision matmuls)."""
    hp = jax.lax.Precision.HIGHEST
    b, n, c = x.shape
    d = c // num_heads
    scale = d ** -0.5

    qkv = jnp.dot(x, w_qkv.T, precision=hp) + b_qkv
    qkv = qkv.reshape(b, n, 3, num_heads, d).transpose(2, 0, 3, 1, 4)
    q, k, v = qkv[0], qkv[1], qkv[2]

    attn = jnp.einsum("bhqd,bhkd->bhqk", q, k, precision=hp) * scale
    attn = jax.nn.softmax(attn, axis=-1)
    ctx = jnp.einsum("bhqk,bhkd->bhqd", attn, v, precision=hp)
    ctx = ctx.transpose(0, 2, 1, 3).reshape(b, n, c)
    return jnp.dot(ctx, w_proj.T, precision=hp) + b_proj


if __name__ == "__main__":
    B, N, C, H = 2, 16, 64, 8          # num_heads=8 (module default), head_dim=8

    key = jax.random.PRNGKey(0)
    kx, kq, kp, kb = jax.random.split(key, 4)
    x = jax.random.normal(kx, (B, N, C), jnp.float32)
    w_qkv = jax.random.normal(kq, (3 * C, C), jnp.float32) * (C ** -0.5)
    b_qkv = jnp.zeros((3 * C,), jnp.float32)       # qkv_bias=False
    w_proj = jax.random.normal(kp, (C, C), jnp.float32) * (C ** -0.5)
    b_proj = jax.random.normal(kb, (C,), jnp.float32) * 0.02

    out = attention_forward(x, w_qkv, b_qkv, w_proj, b_proj, H)
    out = jax.block_until_ready(out)

    ref = attention_reference(x, w_qkv, b_qkv, w_proj, b_proj, H)
    assert out.shape == (B, N, C)
    max_err = jnp.max(jnp.abs(out - ref))
    assert jnp.allclose(out, ref, atol=2e-3, rtol=2e-3), (
        f"mismatch vs reference: max |diff| = {max_err}")

    print("KERNEL_OK")
</pallas_src>

<mosaic_0001>
module attributes {stable_mosaic.version = 11 : i64} {
  func.func @_fused_attention_kernel(%arg0: i32, %arg1: memref<1x16x64xf32, #tpu.memory_space<vmem>>, %arg2: memref<64x192xf32, #tpu.memory_space<vmem>>, %arg3: memref<1x192xf32, #tpu.memory_space<vmem>>, %arg4: memref<64x64xf32, #tpu.memory_space<vmem>>, %arg5: memref<1x64xf32, #tpu.memory_space<vmem>>, %arg6: memref<1x16x64xf32, #tpu.memory_space<vmem>>, %arg7: memref<16x64xf32, #tpu.memory_space<vmem>>) attributes {dimension_semantics = [#tpu.dimension_semantics<parallel>], iteration_bounds = array<i64: 2>, scalar_prefetch = 0 : i64, scratch_operands = 1 : i64, tpu.core_type = #tpu.core_type<tc>, window_params = [{transform_indices = @transform_0, window_bounds = array<i64: 1, 16, 64>}, {pipeline_mode = #tpu.pipeline_mode<synchronous>, transform_indices = @transform_1, window_bounds = array<i64: 64, 192>}, {pipeline_mode = #tpu.pipeline_mode<synchronous>, transform_indices = @transform_2, window_bounds = array<i64: 1, 192>}, {pipeline_mode = #tpu.pipeline_mode<synchronous>, transform_indices = @transform_3, window_bounds = array<i64: 64, 64>}, {pipeline_mode = #tpu.pipeline_mode<synchronous>, transform_indices = @transform_4, window_bounds = array<i64: 1, 64>}, {transform_indices = @transform_5, window_bounds = array<i64: 1, 16, 64>}]} {
    %c0 = arith.constant 0 : index
    %c0_0 = arith.constant 0 : index
    %c0_1 = arith.constant 0 : index
    %0 = vector.load %arg1[%c0, %c0_0, %c0_1] : memref<1x16x64xf32, #tpu.memory_space<vmem>>, vector<1x16x64xf32>
    %1 = vector.shape_cast %0 : vector<1x16x64xf32> to vector<16x64xf32>
    %c0_2 = arith.constant 0 : index
    %c0_3 = arith.constant 0 : index
    %2 = vector.load %arg2[%c0_2, %c0_3] : memref<64x192xf32, #tpu.memory_space<vmem>>, vector<64x192xf32>
    %cst = arith.constant dense<0.000000e+00> : vector<16x192xf32>
    %3 = tpu.matmul %1, %2, %cst {dimension_numbers = #tpu.dot_dimension_numbers<[1], [0], [0], [1], [0, 0, 1, 1], [], []>} : vector<16x64xf32>, vector<64x192xf32>, vector<16x192xf32> -> vector<16x192xf32>
    %c0_4 = arith.constant 0 : index
    %c0_5 = arith.constant 0 : index
    %4 = vector.load %arg3[%c0_4, %c0_5] : memref<1x192xf32, #tpu.memory_space<vmem>>, vector<1x192xf32>
    %5 = vector.broadcast %4 : vector<1x192xf32> to vector<16x192xf32>
    %6 = arith.addf %3, %5 : vector<16x192xf32>
    %7 = vector.extract_strided_slice %6 {offsets = [0, 0], sizes = [16, 8], strides = [1, 1]} : vector<16x192xf32> to vector<16x8xf32>
    %8 = vector.extract_strided_slice %6 {offsets = [0, 64], sizes = [16, 8], strides = [1, 1]} : vector<16x192xf32> to vector<16x8xf32>
    %9 = vector.extract_strided_slice %6 {offsets = [0, 128], sizes = [16, 8], strides = [1, 1]} : vector<16x192xf32> to vector<16x8xf32>
    %cst_6 = arith.constant dense<0.000000e+00> : vector<16x16xf32>
    %10 = tpu.matmul %7, %8, %cst_6 {dimension_numbers = #tpu.dot_dimension_numbers<[1], [1], [0], [0], [0, 0, 1, 0], [], []>} : vector<16x8xf32>, vector<16x8xf32>, vector<16x16xf32> -> vector<16x16xf32>
    %cst_7 = arith.constant 0.353553385 : f32
    %11 = vector.broadcast %cst_7 : f32 to vector<16x16xf32>
    %12 = arith.mulf %10, %11 : vector<16x16xf32>
    %cst_8 = arith.constant dense<0xFF800000> : vector<16xf32>
    %13 = vector.multi_reduction <maximumf>, %12, %cst_8 [1] : vector<16x16xf32> to vector<16xf32>
    %14 = vector.shape_cast %13 : vector<16xf32> to vector<16x1xf32>
    %15 = vector.broadcast %14 : vector<16x1xf32> to vector<16x16xf32>
    %16 = arith.subf %12, %15 : vector<16x16xf32>
    %17 = math.exp %16 : vector<16x16xf32>
    %cst_9 = arith.constant dense<0.000000e+00> : vector<16xf32>
    %18 = vector.multi_reduction <add>, %17, %cst_9 [1] : vector<16x16xf32> to vector<16xf32>
    %19 = vector.shape_cast %18 : vector<16xf32> to vector<16x1xf32>
    %cst_10 = arith.constant dense<0.000000e+00> : vector<16x8xf32>
    %20 = tpu.matmul %17, %9, %cst_10 {dimension_numbers = #tpu.dot_dimension_numbers<[1], [0], [0], [1], [0, 0, 1, 1], [], []>} : vector<16x16xf32>, vector<16x8xf32>, vector<16x8xf32> -> vector<16x8xf32>
    %21 = vector.broadcast %19 : vector<16x1xf32> to vector<16x8xf32>
    %22 = arith.divf %20, %21 : vector<16x8xf32>
    %c0_11 = arith.constant 0 : index
    %c0_12 = arith.constant 0 : index
    %23 = vector.load %arg7[%c0_11, %c0_12] : memref<16x64xf32, #tpu.memory_space<vmem>>, vector<16x8xf32>
    tpu.vector_store %arg7[%c0_11, %c0_12], %22 {strides = array<i32>} : memref<16x64xf32, #tpu.memory_space<vmem>>, vector<16x8xf32>,
    %24 = vector.extract_strided_slice %6 {offsets = [0, 8], sizes = [16, 8], strides = [1, 1]} : vector<16x192xf32> to vector<16x8xf32>
    %25 = vector.extract_strided_slice %6 {offsets = [0, 72], sizes = [16, 8], strides = [1, 1]} : vector<16x192xf32> to vector<16x8xf32>
    %26 = vector.extract_strided_slice %6 {offsets = [0, 136], sizes = [16, 8], strides = [1, 1]} : vector<16x192xf32> to vector<16x8xf32>
    %cst_13 = arith.constant dense<0.000000e+00> : vector<16x16xf32>
    %27 = tpu.matmul %24, %25, %cst_13 {dimension_numbers = #tpu.dot_dimension_numbers<[1], [1], [0], [0], [0, 0, 1, 0], [], []>} : vector<16x8xf32>, vector<16x8xf32>, vector<16x16xf32> -> vector<16x16xf32>
    %cst_14 = arith.constant 0.353553385 : f32
    %28 = vector.broadcast %cst_14 : f32 to vector<16x16xf32>
    %29 = arith.mulf %27, %28 : vector<16x16xf32>
    %cst_15 = arith.constant dense<0xFF800000> : vector<16xf32>
    %30 = vector.multi_reduction <maximumf>, %29, %cst_15 [1] : vector<16x16xf32> to vector<16xf32>
    %31 = vector.shape_cast %30 : vector<16xf32> to vector<16x1xf32>
    %32 = vector.broadcast %31 : vector<16x1xf32> to vector<16x16xf32>
    %33 = arith.subf %29, %32 : vector<16x16xf32>
    %34 = math.exp %33 : vector<16x16xf32>
    %cst_16 = arith.constant dense<0.000000e+00> : vector<16xf32>
    %35 = vector.multi_reduction <add>, %34, %cst_16 [1] : vector<16x16xf32> to vector<16xf32>
    %36 = vector.shape_cast %35 : vector<16xf32> to vector<16x1xf32>
    %cst_17 = arith.constant dense<0.000000e+00> : vector<16x8xf32>
    %37 = tpu.matmul %34, %26, %cst_17 {dimension_numbers = #tpu.dot_dimension_numbers<[1], [0], [0], [1], [0, 0, 1, 1], [], []>} : vector<16x16xf32>, vector<16x8xf32>, vector<16x8xf32> -> vector<16x8xf32>
    %38 = vector.broadcast %36 : vector<16x1xf32> to vector<16x8xf32>
    %39 = arith.divf %37, %38 : vector<16x8xf32>
    %c0_18 = arith.constant 0 : index
    %c8 = arith.constant 8 : index
    %40 = vector.load %arg7[%c0_18, %c8] : memref<16x64xf32, #tpu.memory_space<vmem>>, vector<16x8xf32>
    tpu.vector_store %arg7[%c0_18, %c8], %39 {strides = array<i32>} : memref<16x64xf32, #tpu.memory_space<vmem>>, vector<16x8xf32>,
    %41 = vector.extract_strided_slice %6 {offsets = [0, 16], sizes = [16, 8], strides = [1, 1]} : vector<16x192xf32> to vector<16x8xf32>
    %42 = vector.extract_strided_slice %6 {offsets = [0, 80], sizes = [16, 8], strides = [1, 1]} : vector<16x192xf32> to vector<16x8xf32>
    %43 = vector.extract_strided_slice %6 {offsets = [0, 144], sizes = [16, 8], strides = [1, 1]} : vector<16x192xf32> to vector<16x8xf32>
    %cst_19 = arith.constant dense<0.000000e+00> : vector<16x16xf32>
    %44 = tpu.matmul %41, %42, %cst_19 {dimension_numbers = #tpu.dot_dimension_numbers<[1], [1], [0], [0], [0, 0, 1, 0], [], []>} : vector<16x8xf32>, vector<16x8xf32>, vector<16x16xf32> -> vector<16x16xf32>
    %cst_20 = arith.constant 0.353553385 : f32
    %45 = vector.broadcast %cst_20 : f32 to vector<16x16xf32>
    %46 = arith.mulf %44, %45 : vector<16x16xf32>
    %cst_21 = arith.constant dense<0xFF800000> : vector<16xf32>
    %47 = vector.multi_reduction <maximumf>, %46, %cst_21 [1] : vector<16x16xf32> to vector<16xf32>
    %48 = vector.shape_cast %47 : vector<16xf32> to vector<16x1xf32>
    %49 = vector.broadcast %48 : vector<16x1xf32> to vector<16x16xf32>
    %50 = arith.subf %46, %49 : vector<16x16xf32>
    %51 = math.exp %50 : vector<16x16xf32>
    %cst_22 = arith.constant dense<0.000000e+00> : vector<16xf32>
    %52 = vector.multi_reduction <add>, %51, %cst_22 [1] : vector<16x16xf32> to vector<16xf32>
    %53 = vector.shape_cast %52 : vector<16xf32> to vector<16x1xf32>
    %cst_23 = arith.constant dense<0.000000e+00> : vector<16x8xf32>
    %54 = tpu.matmul %51, %43, %cst_23 {dimension_numbers = #tpu.dot_dimension_numbers<[1], [0], [0], [1], [0, 0, 1, 1], [], []>} : vector<16x16xf32>, vector<16x8xf32>, vector<16x8xf32> -> vector<16x8xf32>
    %55 = vector.broadcast %53 : vector<16x1xf32> to vector<16x8xf32>
    %56 = arith.divf %54, %55 : vector<16x8xf32>
    %c0_24 = arith.constant 0 : index
    %c16 = arith.constant 16 : index
    %57 = vector.load %arg7[%c0_24, %c16] : memref<16x64xf32, #tpu.memory_space<vmem>>, vector<16x8xf32>
    tpu.vector_store %arg7[%c0_24, %c16], %56 {strides = array<i32>} : memref<16x64xf32, #tpu.memory_space<vmem>>, vector<16x8xf32>,
    %58 = vector.extract_strided_slice %6 {offsets = [0, 24], sizes = [16, 8], strides = [1, 1]} : vector<16x192xf32> to vector<16x8xf32>
    %59 = vector.extract_strided_slice %6 {offsets = [0, 88], sizes = [16, 8], strides = [1, 1]} : vector<16x192xf32> to vector<16x8xf32>
    %60 = vector.extract_strided_slice %6 {offsets = [0, 152], sizes = [16, 8], strides = [1, 1]} : vector<16x192xf32> to vector<16x8xf32>
    %cst_25 = arith.constant dense<0.000000e+00> : vector<16x16xf32>
    %61 = tpu.matmul %58, %59, %cst_25 {dimension_numbers = #tpu.dot_dimension_numbers<[1], [1], [0], [0], [0, 0, 1, 0], [], []>} : vector<16x8xf32>, vector<16x8xf32>, vector<16x16xf32> -> vector<16x16xf32>
    %cst_26 = arith.constant 0.353553385 : f32
    %62 = vector.broadcast %cst_26 : f32 to vector<16x16xf32>
    %63 = arith.mulf %61, %62 : vector<16x16xf32>
    %cst_27 = arith.constant dense<0xFF800000> : vector<16xf32>
    %64 = vector.multi_reduction <maximumf>, %63, %cst_27 [1] : vector<16x16xf32> to vector<16xf32>
    %65 = vector.shape_cast %64 : vector<16xf32> to vector<16x1xf32>
    %66 = vector.broadcast %65 : vector<16x1xf32> to vector<16x16xf32>
    %67 = arith.subf %63, %66 : vector<16x16xf32>
    %68 = math.exp %67 : vector<16x16xf32>
    %cst_28 = arith.constant dense<0.000000e+00> : vector<16xf32>
    %69 = vector.multi_reduction <add>, %68, %cst_28 [1] : vector<16x16xf32> to vector<16xf32>
    %70 = vector.shape_cast %69 : vector<16xf32> to vector<16x1xf32>
    %cst_29 = arith.constant dense<0.000000e+00> : vector<16x8xf32>
    %71 = tpu.matmul %68, %60, %cst_29 {dimension_numbers = #tpu.dot_dimension_numbers<[1], [0], [0], [1], [0, 0, 1, 1], [], []>} : vector<16x16xf32>, vector<16x8xf32>, vector<16x8xf32> -> vector<16x8xf32>
    %72 = vector.broadcast %70 : vector<16x1xf32> to vector<16x8xf32>
    %73 = arith.divf %71, %72 : vector<16x8xf32>
    %c0_30 = arith.constant 0 : index
    %c24 = arith.constant 24 : index
    %74 = vector.load %arg7[%c0_30, %c24] : memref<16x64xf32, #tpu.memory_space<vmem>>, vector<16x8xf32>
    tpu.vector_store %arg7[%c0_30, %c24], %73 {strides = array<i32>} : memref<16x64xf32, #tpu.memory_space<vmem>>, vector<16x8xf32>,
    %75 = vector.extract_strided_slice %6 {offsets = [0, 32], sizes = [16, 8], strides = [1, 1]} : vector<16x192xf32> to vector<16x8xf32>
    %76 = vector.extract_strided_slice %6 {offsets = [0, 96], sizes = [16, 8], strides = [1, 1]} : vector<16x192xf32> to vector<16x8xf32>
    %77 = vector.extract_strided_slice %6 {offsets = [0, 160], sizes = [16, 8], strides = [1, 1]} : vector<16x192xf32> to vector<16x8xf32>
    %cst_31 = arith.constant dense<0.000000e+00> : vector<16x16xf32>
    %78 = tpu.matmul %75, %76, %cst_31 {dimension_numbers = #tpu.dot_dimension_numbers<[1], [1], [0], [0], [0, 0, 1, 0], [], []>} : vector<16x8xf32>, vector<16x8xf32>, vector<16x16xf32> -> vector<16x16xf32>
    %cst_32 = arith.constant 0.353553385 : f32
    %79 = vector.broadcast %cst_32 : f32 to vector<16x16xf32>
    %80 = arith.mulf %78, %79 : vector<16x16xf32>
    %cst_33 = arith.constant dense<0xFF800000> : vector<16xf32>
    %81 = vector.multi_reduction <maximumf>, %80, %cst_33 [1] : vector<16x16xf32> to vector<16xf32>
    %82 = vector.shape_cast %81 : vector<16xf32> to vector<16x1xf32>
    %83 = vector.broadcast %82 : vector<16x1xf32> to vector<16x16xf32>
    %84 = arith.subf %80, %83 : vector<16x16xf32>
    %85 = math.exp %84 : vector<16x16xf32>
    %cst_34 = arith.constant dense<0.000000e+00> : vector<16xf32>
    %86 = vector.multi_reduction <add>, %85, %cst_34 [1] : vector<16x16xf32> to vector<16xf32>
    %87 = vector.shape_cast %86 : vector<16xf32> to vector<16x1xf32>
    %cst_35 = arith.constant dense<0.000000e+00> : vector<16x8xf32>
    %88 = tpu.matmul %85, %77, %cst_35 {dimension_numbers = #tpu.dot_dimension_numbers<[1], [0], [0], [1], [0, 0, 1, 1], [], []>} : vector<16x16xf32>, vector<16x8xf32>, vector<16x8xf32> -> vector<16x8xf32>
    %89 = vector.broadcast %87 : vector<16x1xf32> to vector<16x8xf32>
    %90 = arith.divf %88, %89 : vector<16x8xf32>
    %c0_36 = arith.constant 0 : index
    %c32 = arith.constant 32 : index
    %91 = vector.load %arg7[%c0_36, %c32] : memref<16x64xf32, #tpu.memory_space<vmem>>, vector<16x8xf32>
    tpu.vector_store %arg7[%c0_36, %c32], %90 {strides = array<i32>} : memref<16x64xf32, #tpu.memory_space<vmem>>, vector<16x8xf32>,
    %92 = vector.extract_strided_slice %6 {offsets = [0, 40], sizes = [16, 8], strides = [1, 1]} : vector<16x192xf32> to vector<16x8xf32>
    %93 = vector.extract_strided_slice %6 {offsets = [0, 104], sizes = [16, 8], strides = [1, 1]} : vector<16x192xf32> to vector<16x8xf32>
    %94 = vector.extract_strided_slice %6 {offsets = [0, 168], sizes = [16, 8], strides = [1, 1]} : vector<16x192xf32> to vector<16x8xf32>
    %cst_37 = arith.constant dense<0.000000e+00> : vector<16x16xf32>
    %95 = tpu.matmul %92, %93, %cst_37 {dimension_numbers = #tpu.dot_dimension_numbers<[1], [1], [0], [0], [0, 0, 1, 0], [], []>} : vector<16x8xf32>, vector<16x8xf32>, vector<16x16xf32> -> vector<16x16xf32>
    %cst_38 = arith.constant 0.353553385 : f32
    %96 = vector.broadcast %cst_38 : f32 to vector<16x16xf32>
    %97 = arith.mulf %95, %96 : vector<16x16xf32>
    %cst_39 = arith.constant dense<0xFF800000> : vector<16xf32>
    %98 = vector.multi_reduction <maximumf>, %97, %cst_39 [1] : vector<16x16xf32> to vector<16xf32>
    %99 = vector.shape_cast %98 : vector<16xf32> to vector<16x1xf32>
    %100 = vector.broadcast %99 : vector<16x1xf32> to vector<16x16xf32>
    %101 = arith.subf %97, %100 : vector<16x16xf32>
    %102 = math.exp %101 : vector<16x16xf32>
    %cst_40 = arith.constant dense<0.000000e+00> : vector<16xf32>
    %103 = vector.multi_reduction <add>, %102, %cst_40 [1] : vector<16x16xf32> to vector<16xf32>
    %104 = vector.shape_cast %103 : vector<16xf32> to vector<16x1xf32>
    %cst_41 = arith.constant dense<0.000000e+00> : vector<16x8xf32>
    %105 = tpu.matmul %102, %94, %cst_41 {dimension_numbers = #tpu.dot_dimension_numbers<[1], [0], [0], [1], [0, 0, 1, 1], [], []>} : vector<16x16xf32>, vector<16x8xf32>, vector<16x8xf32> -> vector<16x8xf32>
    %106 = vector.broadcast %104 : vector<16x1xf32> to vector<16x8xf32>
    %107 = arith.divf %105, %106 : vector<16x8xf32>
    %c0_42 = arith.constant 0 : index
    %c40 = arith.constant 40 : index
    %108 = vector.load %arg7[%c0_42, %c40] : memref<16x64xf32, #tpu.memory_space<vmem>>, vector<16x8xf32>
    tpu.vector_store %arg7[%c0_42, %c40], %107 {strides = array<i32>} : memref<16x64xf32, #tpu.memory_space<vmem>>, vector<16x8xf32>,
    %109 = vector.extract_strided_slice %6 {offsets = [0, 48], sizes = [16, 8], strides = [1, 1]} : vector<16x192xf32> to vector<16x8xf32>
    %110 = vector.extract_strided_slice %6 {offsets = [0, 112], sizes = [16, 8], strides = [1, 1]} : vector<16x192xf32> to vector<16x8xf32>
    %111 = vector.extract_strided_slice %6 {offsets = [0, 176], sizes = [16, 8], strides = [1, 1]} : vector<16x192xf32> to vector<16x8xf32>
    %cst_43 = arith.constant dense<0.000000e+00> : vector<16x16xf32>
    %112 = tpu.matmul %109, %110, %cst_43 {dimension_numbers = #tpu.dot_dimension_numbers<[1], [1], [0], [0], [0, 0, 1, 0], [], []>} : vector<16x8xf32>, vector<16x8xf32>, vector<16x16xf32> -> vector<16x16xf32>
    %cst_44 = arith.constant 0.353553385 : f32
    %113 = vector.broadcast %cst_44 : f32 to vector<16x16xf32>
    %114 = arith.mulf %112, %113 : vector<16x16xf32>
    %cst_45 = arith.constant dense<0xFF800000> : vector<16xf32>
    %115 = vector.multi_reduction <maximumf>, %114, %cst_45 [1] : vector<16x16xf32> to vector<16xf32>
    %116 = vector.shape_cast %115 : vector<16xf32> to vector<16x1xf32>
    %117 = vector.broadcast %116 : vector<16x1xf32> to vector<16x16xf32>
    %118 = arith.subf %114, %117 : vector<16x16xf32>
    %119 = math.exp %118 : vector<16x16xf32>
    %cst_46 = arith.constant dense<0.000000e+00> : vector<16xf32>
    %120 = vector.multi_reduction <add>, %119, %cst_46 [1] : vector<16x16xf32> to vector<16xf32>
    %121 = vector.shape_cast %120 : vector<16xf32> to vector<16x1xf32>
    %cst_47 = arith.constant dense<0.000000e+00> : vector<16x8xf32>
    %122 = tpu.matmul %119, %111, %cst_47 {dimension_numbers = #tpu.dot_dimension_numbers<[1], [0], [0], [1], [0, 0, 1, 1], [], []>} : vector<16x16xf32>, vector<16x8xf32>, vector<16x8xf32> -> vector<16x8xf32>
    %123 = vector.broadcast %121 : vector<16x1xf32> to vector<16x8xf32>
    %124 = arith.divf %122, %123 : vector<16x8xf32>
    %c0_48 = arith.constant 0 : index
    %c48 = arith.constant 48 : index
    %125 = vector.load %arg7[%c0_48, %c48] : memref<16x64xf32, #tpu.memory_space<vmem>>, vector<16x8xf32>
    tpu.vector_store %arg7[%c0_48, %c48], %124 {strides = array<i32>} : memref<16x64xf32, #tpu.memory_space<vmem>>, vector<16x8xf32>,
    %126 = vector.extract_strided_slice %6 {offsets = [0, 56], sizes = [16, 8], strides = [1, 1]} : vector<16x192xf32> to vector<16x8xf32>
    %127 = vector.extract_strided_slice %6 {offsets = [0, 120], sizes = [16, 8], strides = [1, 1]} : vector<16x192xf32> to vector<16x8xf32>
    %128 = vector.extract_strided_slice %6 {offsets = [0, 184], sizes = [16, 8], strides = [1, 1]} : vector<16x192xf32> to vector<16x8xf32>
    %cst_49 = arith.constant dense<0.000000e+00> : vector<16x16xf32>
    %129 = tpu.matmul %126, %127, %cst_49 {dimension_numbers = #tpu.dot_dimension_numbers<[1], [1], [0], [0], [0, 0, 1, 0], [], []>} : vector<16x8xf32>, vector<16x8xf32>, vector<16x16xf32> -> vector<16x16xf32>
    %cst_50 = arith.constant 0.353553385 : f32
    %130 = vector.broadcast %cst_50 : f32 to vector<16x16xf32>
    %131 = arith.mulf %129, %130 : vector<16x16xf32>
    %cst_51 = arith.constant dense<0xFF800000> : vector<16xf32>
    %132 = vector.multi_reduction <maximumf>, %131, %cst_51 [1] : vector<16x16xf32> to vector<16xf32>
    %133 = vector.shape_cast %132 : vector<16xf32> to vector<16x1xf32>
    %134 = vector.broadcast %133 : vector<16x1xf32> to vector<16x16xf32>
    %135 = arith.subf %131, %134 : vector<16x16xf32>
    %136 = math.exp %135 : vector<16x16xf32>
    %cst_52 = arith.constant dense<0.000000e+00> : vector<16xf32>
    %137 = vector.multi_reduction <add>, %136, %cst_52 [1] : vector<16x16xf32> to vector<16xf32>
    %138 = vector.shape_cast %137 : vector<16xf32> to vector<16x1xf32>
    %cst_53 = arith.constant dense<0.000000e+00> : vector<16x8xf32>
    %139 = tpu.matmul %136, %128, %cst_53 {dimension_numbers = #tpu.dot_dimension_numbers<[1], [0], [0], [1], [0, 0, 1, 1], [], []>} : vector<16x16xf32>, vector<16x8xf32>, vector<16x8xf32> -> vector<16x8xf32>
    %140 = vector.broadcast %138 : vector<16x1xf32> to vector<16x8xf32>
    %141 = arith.divf %139, %140 : vector<16x8xf32>
    %c0_54 = arith.constant 0 : index
    %c56 = arith.constant 56 : index
    %142 = vector.load %arg7[%c0_54, %c56] : memref<16x64xf32, #tpu.memory_space<vmem>>, vector<16x8xf32>
    tpu.vector_store %arg7[%c0_54, %c56], %141 {strides = array<i32>} : memref<16x64xf32, #tpu.memory_space<vmem>>, vector<16x8xf32>,
    %c0_55 = arith.constant 0 : index
    %c0_56 = arith.constant 0 : index
    %143 = vector.load %arg7[%c0_55, %c0_56] : memref<16x64xf32, #tpu.memory_space<vmem>>, vector<16x64xf32>
    %c0_57 = arith.constant 0 : index
    %c0_58 = arith.constant 0 : index
    %144 = vector.load %arg4[%c0_57, %c0_58] : memref<64x64xf32, #tpu.memory_space<vmem>>, vector<64x64xf32>
    %cst_59 = arith.constant dense<0.000000e+00> : vector<16x64xf32>
    %145 = tpu.matmul %143, %144, %cst_59 {dimension_numbers = #tpu.dot_dimension_numbers<[1], [0], [0], [1], [0, 0, 1, 1], [], []>} : vector<16x64xf32>, vector<64x64xf32>, vector<16x64xf32> -> vector<16x64xf32>
    %c0_60 = arith.constant 0 : index
    %c0_61 = arith.constant 0 : index
    %146 = vector.load %arg5[%c0_60, %c0_61] : memref<1x64xf32, #tpu.memory_space<vmem>>, vector<1x64xf32>
    %147 = vector.broadcast %146 : vector<1x64xf32> to vector<16x64xf32>
    %148 = arith.addf %145, %147 : vector<16x64xf32>
    %c0_62 = arith.constant 0 : index
    %c0_63 = arith.constant 0 : index
    %c0_64 = arith.constant 0 : index
    %149 = vector.load %arg6[%c0_62, %c0_63, %c0_64] : memref<1x16x64xf32, #tpu.memory_space<vmem>>, vector<1x16x64xf32>
    %150 = vector.shape_cast %149 : vector<1x16x64xf32> to vector<16x64xf32>
    %151 = vector.shape_cast %148 : vector<16x64xf32> to vector<1x16x64xf32>
    tpu.vector_store %arg6[%c0_62, %c0_63, %c0_64], %151 {strides = array<i32>} : memref<1x16x64xf32, #tpu.memory_space<vmem>>, vector<1x16x64xf32>,
    return
  }
  func.func @transform_0(%arg0: i32) -> (i32, i32, i32) {
    %c0_i32 = arith.constant 0 : i32
    %c0_i32_0 = arith.constant 0 : i32
    %c0_i32_1 = arith.constant 0 : i32
    return %arg0, %c0_i32, %c0_i32_0 : i32, i32, i32
  }
  func.func @transform_1(%arg0: i32) -> (i32, i32) {
    %c0_i32 = arith.constant 0 : i32
    %c0_i32_0 = arith.constant 0 : i32
    %c0_i32_1 = arith.constant 0 : i32
    return %c0_i32, %c0_i32_0 : i32, i32
  }
  func.func @transform_2(%arg0: i32) -> (i32, i32) {
    %c0_i32 = arith.constant 0 : i32
    %c0_i32_0 = arith.constant 0 : i32
    %c0_i32_1 = arith.constant 0 : i32
    return %c0_i32, %c0_i32_0 : i32, i32
  }
  func.func @transform_3(%arg0: i32) -> (i32, i32) {
    %c0_i32 = arith.constant 0 : i32
    %c0_i32_0 = arith.constant 0 : i32
    %c0_i32_1 = arith.constant 0 : i32
    return %c0_i32, %c0_i32_0 : i32, i32
  }
  func.func @transform_4(%arg0: i32) -> (i32, i32) {
    %c0_i32 = arith.constant 0 : i32
    %c0_i32_0 = arith.constant 0 : i32
    %c0_i32_1 = arith.constant 0 : i32
    return %c0_i32, %c0_i32_0 : i32, i32
  }
  func.func @transform_5(%arg0: i32) -> (i32, i32, i32) {
    %c0_i32 = arith.constant 0 : i32
    %c0_i32_0 = arith.constant 0 : i32
    %c0_i32_1 = arith.constant 0 : i32
    return %arg0, %c0_i32, %c0_i32_0 : i32, i32, i32
  }
}

</mosaic_0001>

<llo_original>
// kernel: tpu_custom_call.1
$region0: #{tpu_custom_call.1}
  #allocation0 [shape = 'u32[]', space=smem, size = 0x4, offset = 0x4, fixed_abs, tag = 'smem constant byte address 0x4 - core index']
  #allocation1 [shape = 'u32[144,128]{1,0:T(1,128)}', space=vmem, size = 0x12000, scoped, tag = 'internal scratch']
  #allocation2 [shape = 'f32[16,64]{1,0:T(8,128)}', space=vmem, size = 0x2000, scoped, tag = 'scratch operand']
  %s0 = inlined_call_operand.hbm [shape: f32[2,16,64], index: 0, kind: input, shape index: {}]
  %s1 = inlined_call_operand.hbm [shape: f32[64,192], index: 1, kind: input, shape index: {}]
  %s2 = inlined_call_operand.vmem [shape: f32[1,192], index: 2, kind: input, shape index: {}]
  %s3 = inlined_call_operand.hbm [shape: f32[64,64], index: 3, kind: input, shape index: {}]
  %s4 = inlined_call_operand.vmem [shape: f32[1,64], index: 4, kind: input, shape index: {}]
  %s5 = inlined_call_operand.hbm [shape: f32[2,16,64], index: 5, kind: output, shape index: {}]
  %s6 = sld [smem:[#allocation0]]
  $region65: #{tpu_custom_call.1} parent=0
    _
  %s8 = ssub.s32 1, %s6
  %s9 = scalar_select 0, %s8, %s6
  $region1: #{tpu_custom_call.1} parent=0
    #allocation3 [shape = 'u8[16384]{0}', space=vmem, size = 0x4000, scoped, tag = 'input window, operand 0']
    #allocation4 [shape = 's32[2]{0}', space=sflag, size = 0x8, scoped, tag = 'scoped memory for tpu_custom_call.1']
    #allocation5 [shape = 's32[2]{0}', space=sflag, size = 0x8, scoped, tag = 'scoped memory for tpu_custom_call.1']
    #allocation6 [shape = 'u8[65536]{0}', space=vmem, size = 0x10000, scoped, tag = 'input window, operand 1, single buffered']
    #allocation7 [shape = 's32[1]{0}', space=sflag, size = 0x4, scoped, tag = 'scoped memory for tpu_custom_call.1']
    #allocation8 [shape = 'u8[32768]{0}', space=vmem, size = 0x8000, scoped, tag = 'input window, operand 3, single buffered']
    #allocation9 [shape = 'u8[16384]{0}', space=vmem, size = 0x4000, scoped, tag = 'output window, operand 0']
    %10 = vsyncpa [#allocation4], 0
    %s11 = scalar_lea.sflag [#allocation4], 1
    %12 = vsyncpa %s11, 0
    %13 = vsyncpa [#allocation7], 0
    %14 = vsyncpa [#allocation5], 0
    %s15 = scalar_lea.sflag [#allocation5], 1
    %16 = vsyncpa %s15, 0
    loop: start=0, step=1, limit=4
    $region2: #{tpu_custom_call.1} parent=1 // loop_pre_header
      _
    $region3: #{tpu_custom_call.1} parent=1 // loop_header
      %s18 = sphi 0, %s22
      %p19 = scmp.ge.s32.totalorder %s18, 4
      %s28 = sphi 0, %s30
      %s31 = sphi 0, %s28
      %s32 = sphi 0, %s31
      %s48 = sphi 0, %s32
      %s52 = sphi 0, %s52
      %s54 = sphi 0, %s52
      %s55 = sphi 0, %s54
      %s69 = sphi 0, %s55
      %s73 = sphi 0, %s73
      %s75 = sphi 0, %s73
      %s76 = sphi 0, %s75
      %s90 = sphi 0, %s76
      %s94 = sphi 0, %s94
      %s96 = sphi 0, %s94
      %s97 = sphi 0, %s96
      %s111 = sphi 0, %s97
      %s115 = sphi 0, %s115
      %s117 = sphi 0, %s115
      %s118 = sphi 0, %s117
      %s132 = sphi 0, %s118
      %s138 = sphi 0, %s140
      %s141 = sphi 0, %s138
      %s142 = sphi 0, %s141
      %s158 = sphi 0, %s142
    $region4: #{tpu_custom_call.1} parent=1 // loop_header_branch
      %21 = sbr.rel (%p19) target = $region8
    $region5: #{tpu_custom_call.1} parent=1 // loop_body
      %s23 = ssub.s32 %s18, 1
      %s24 = ssub.s32 %s18, 2
      %s25 = sadd.s32 %s18, 1
      %s26 = ssub.s32 %s18, %s25
      %p27 = scmp.eq.s32.totalorder %s26, 0
      %s29 = sadd.s32 %s28, 1
      %s30 = scalar_select %p27, %s28, %s29
      %p33 = pneg %p27
      %p34 = scmp.eq.s32.totalorder %s18, 1
      %p35 = por %p33, %p34
      %p36 = scmp.ne.s32.totalorder %s28, %s31
      %p37 = scmp.eq.s32.totalorder %s18, 0
      %p38 = por %p36, %p37
      %p39 = scmp.ne.s32.totalorder %s28, %s31
      %p40 = scmp.eq.s32.totalorder %s23, 1
      %p41 = por %p39, %p40
      %p42 = scmp.ne.s32.totalorder %s31, %s32
      %p43 = scmp.eq.s32.totalorder %s23, 0
      %p44 = por %p42, %p43
      %p45 = scmp.ne.s32.totalorder %s31, %s32
      %p46 = scmp.eq.s32.totalorder %s24, 1
      %p47 = por %p45, %p46
      %p49 = scmp.ne.s32.totalorder %s32, %s48
      %p50 = scmp.eq.s32.totalorder %s24, 0
      %p51 = por %p49, %p50
      %s53 = sadd.s32 %s52, 1
      %p56 = scmp.eq.s32.totalorder %s18, 1
      %p57 = scmp.ne.s32.totalorder %s52, %s54
      %p58 = scmp.eq.s32.totalorder %s18, 0
      %p59 = por %p57, %p58
      %p60 = scmp.ne.s32.totalorder %s52, %s54
      %p61 = scmp.eq.s32.totalorder %s23, 1
      %p62 = por %p60, %p61
      %p63 = scmp.ne.s32.totalorder %s54, %s55
      %p64 = scmp.eq.s32.totalorder %s23, 0
      %p65 = por %p63, %p64
      %p66 = scmp.ne.s32.totalorder %s54, %s55
      %p67 = scmp.eq.s32.totalorder %s24, 1
      %p68 = por %p66, %p67
      %p70 = scmp.ne.s32.totalorder %s55, %s69
      %p71 = scmp.eq.s32.totalorder %s24, 0
      %p72 = por %p70, %p71
      %s74 = sadd.s32 %s73, 1
      %p77 = scmp.eq.s32.totalorder %s18, 1
      %p78 = scmp.ne.s32.totalorder %s73, %s75
      %p79 = scmp.eq.s32.totalorder %s18, 0
      %p80 = por %p78, %p79
      %p81 = scmp.ne.s32.totalorder %s73, %s75
      %p82 = scmp.eq.s32.totalorder %s23, 1
      %p83 = por %p81, %p82
      %p84 = scmp.ne.s32.totalorder %s75, %s76
      %p85 = scmp.eq.s32.totalorder %s23, 0
      %p86 = por %p84, %p85
      %p87 = scmp.ne.s32.totalorder %s75, %s76
      %p88 = scmp.eq.s32.totalorder %s24, 1
      %p89 = por %p87, %p88
      %p91 = scmp.ne.s32.totalorder %s76, %s90
      %p92 = scmp.eq.s32.totalorder %s24, 0
      %p93 = por %p91, %p92
      %s95 = sadd.s32 %s94, 1
      %p98 = scmp.eq.s32.totalorder %s18, 1
      %p99 = scmp.ne.s32.totalorder %s94, %s96
      %p100 = scmp.eq.s32.totalorder %s18, 0
      %p101 = por %p99, %p100
      %p102 = scmp.ne.s32.totalorder %s94, %s96
      %p103 = scmp.eq.s32.totalorder %s23, 1
      %p104 = por %p102, %p103
      %p105 = scmp.ne.s32.totalorder %s96, %s97
      %p106 = scmp.eq.s32.totalorder %s23, 0
      %p107 = por %p105, %p106
      %p108 = scmp.ne.s32.totalorder %s96, %s97
      %p109 = scmp.eq.s32.totalorder %s24, 1
      %p110 = por %p108, %p109
      %p112 = scmp.ne.s32.totalorder %s97, %s111
      %p113 = scmp.eq.s32.totalorder %s24, 0
      %p114 = por %p112, %p113
      %s116 = sadd.s32 %s115, 1
      %p119 = scmp.eq.s32.totalorder %s18, 1
      %p120 = scmp.ne.s32.totalorder %s115, %s117
      %p121 = scmp.eq.s32.totalorder %s18, 0
      %p122 = por %p120, %p121
      %p123 = scmp.ne.s32.totalorder %s115, %s117
      %p124 = scmp.eq.s32.totalorder %s23, 1
      %p125 = por %p123, %p124
      %p126 = scmp.ne.s32.totalorder %s117, %s118
      %p127 = scmp.eq.s32.totalorder %s23, 0
      %p128 = por %p126, %p127
      %p129 = scmp.ne.s32.totalorder %s117, %s118
      %p130 = scmp.eq.s32.totalorder %s24, 1
      %p131 = por %p129, %p130
      %p133 = scmp.ne.s32.totalorder %s118, %s132
      %p134 = scmp.eq.s32.totalorder %s24, 0
      %p135 = por %p133, %p134
      %s136 = ssub.s32 %s18, %s25
      %p137 = scmp.eq.s32.totalorder %s136, 0
      %s139 = sadd.s32 %s138, 1
      %s140 = scalar_select %p137, %s138, %s139
      %p143 = pneg %p137
      %p144 = scmp.eq.s32.totalorder %s18, 1
      %p145 = por %p143, %p144
      %p146 = scmp.ne.s32.totalorder %s138, %s141
      %p147 = scmp.eq.s32.totalorder %s18, 0
      %p148 = por %p146, %p147
      %p149 = scmp.ne.s32.totalorder %s138, %s141
      %p150 = scmp.eq.s32.totalorder %s23, 1
      %p151 = por %p149, %p150
      %p152 = scmp.ne.s32.totalorder %s141, %s142
      %p153 = scmp.eq.s32.totalorder %s23, 0
      %p154 = por %p152, %p153
      %p155 = scmp.ne.s32.totalorder %s141, %s142
      %p156 = scmp.eq.s32.totalorder %s24, 1
      %p157 = por %p155, %p156
      %p159 = scmp.ne.s32.totalorder %s142, %s158
      %p160 = scmp.eq.s32.totalorder %s24, 0
      %p161 = por %p159, %p160
      %p162 = scmp.le.s32.totalorder 1, %s18
      %p163 = scmp.lt.s32.totalorder %s18, 3
      %p164 = pnand %p162, %p163
      %p165 = pneg %p164
      // Predicated region
      $region9: #{tpu_custom_call.1} parent=5 // pred_check
        _
      $region10: #{tpu_custom_call.1} parent=5 // pred_check_branch
        %167 = sbr.rel (%p164) target = $region12
      $region11: #{tpu_custom_call.1} parent=5 // pred_region
        %s168 = ssub.s32 %s18, 1
        // Predicated region
        $region13: #{tpu_custom_call.1} parent=11 // pred_check
          %p169 = pneg %p65
        $region14: #{tpu_custom_call.1} parent=11 // pred_check_branch
          %171 = sbr.rel (%p169) target = $region16
        $region15: #{tpu_custom_call.1} parent=11 // pred_region
          %s173 = ssub.s32 2048, 2048
          %174 = vsyncadd [#allocation7], %s173
          %s175 = sshll.u32 [#allocation6], 4
          %s176 = int_to_ptr.vmem [resolvable:$true] %s175
          %181 = dma.hbm_to_vmem [thread:$0]  %s1, 2048, %s176, [#allocation7], 256, 256, 16
        $region16: #{tpu_custom_call.1} parent=11 // pred_fallthru
          _
        // Predicated region
        $region17: #{tpu_custom_call.1} parent=11 // pred_check
          %p182 = pneg %p86
        $region18: #{tpu_custom_call.1} parent=11 // pred_check_branch
          %184 = sbr.rel (%p182) target = $region20
        $region19: #{tpu_custom_call.1} parent=11 // pred_region
          _
        $region20: #{tpu_custom_call.1} parent=11 // pred_fallthru
          _
        // Predicated region
        $region21: #{tpu_custom_call.1} parent=11 // pred_check
          %p185 = pneg %p107
        $region22: #{tpu_custom_call.1} parent=11 // pred_check_branch
          %187 = sbr.rel (%p185) target = $region24
        $region23: #{tpu_custom_call.1} parent=11 // pred_region
          %s189 = ssub.s32 1024, 1024
          %190 = vsyncadd [#allocation7], %s189
          %s191 = sshll.u32 [#allocation8], 4
          %s192 = int_to_ptr.vmem [resolvable:$true] %s191
          %197 = dma.hbm_to_vmem [thread:$0]  %s3, 1024, %s192, [#allocation7], 128, 128, 8
        $region24: #{tpu_custom_call.1} parent=11 // pred_fallthru
          _
        // Predicated region
        $region25: #{tpu_custom_call.1} parent=11 // pred_check
          %p198 = pneg %p128
        $region26: #{tpu_custom_call.1} parent=11 // pred_check_branch
          %200 = sbr.rel (%p198) target = $region28
        $region27: #{tpu_custom_call.1} parent=11 // pred_region
          _
        $region28: #{tpu_custom_call.1} parent=11 // pred_fallthru
          _
      $region12: #{tpu_custom_call.1} parent=5 // pred_fallthru
        _
      %p201 = scmp.lt.s32.totalorder %s18, 2
      // Predicated region
      $region29: #{tpu_custom_call.1} parent=5 // pred_check
        %p202 = pneg %p201
      $region30: #{tpu_custom_call.1} parent=5 // pred_check_branch
        %204 = sbr.rel (%p202) target = $region32
      $region31: #{tpu_custom_call.1} parent=5 // pred_region
        // Predicated region
        $region33: #{tpu_custom_call.1} parent=31 // pred_check
          %p205 = pneg %p38
        $region34: #{tpu_custom_call.1} parent=31 // pred_check_branch
          %207 = sbr.rel (%p205) target = $region36
        $region35: #{tpu_custom_call.1} parent=31 // pred_region
          %s208 = sand.u32 %s28, 1
          %s209 = scalar_lea.sflag [#allocation4], %s208
          %s210 = sand.u32 %s28, 1
          %s211 = smul.addr %s210, 16
          %s212 = scalar_lea.vmem [#allocation3], %s211
          %s214 = ssub.s32 256, 256
          %215 = vsyncadd %s209, %s214
          %s216 = smul.addr %s18, 2
          %s217 = smul.addr %s216, 128
          %s218 = scalar_lea.hbm %s0, %s217
          %s219 = sshll.u32 %s212, 4
          %s220 = int_to_ptr.vmem [resolvable:$true] %s219
          %225 = dma.hbm_to_vmem [thread:$0]  %s218, 256, %s220, %s209, 128, 128, 8
        $region36: #{tpu_custom_call.1} parent=31 // pred_fallthru
          _
      $region32: #{tpu_custom_call.1} parent=5 // pred_fallthru
        _
      %p226 = scmp.le.s32.totalorder 1, %s18
      %p227 = scmp.lt.s32.totalorder %s18, 3
      %p228 = pnand %p226, %p227
      %p229 = pneg %p228
      // Predicated region
      $region37: #{tpu_custom_call.1} parent=5 // pred_check
        _
      $region38: #{tpu_custom_call.1} parent=5 // pred_check_branch
        %231 = sbr.rel (%p228) target = $region40
      $region39: #{tpu_custom_call.1} parent=5 // pred_region
        %s232 = ssub.s32 %s18, 1
        %s233 = sand.u32 %s31, 1
        %s234 = scalar_lea.sflag [#allocation4], %s233
        %s235 = sand.u32 %s31, 1
        %s236 = smul.addr %s235, 16
        %s237 = scalar_lea.vmem [#allocation3], %s236
        // Predicated region
        $region41: #{tpu_custom_call.1} parent=39 // pred_check
          %p238 = pneg %p44
        $region42: #{tpu_custom_call.1} parent=39 // pred_check_branch
          %240 = sbr.rel (%p238) target = $region44
        $region43: #{tpu_custom_call.1} parent=39 // pred_region
          %241 = dma.done %s234, 256
        $region44: #{tpu_custom_call.1} parent=39 // pred_fallthru
          _
        // Predicated region
        $region45: #{tpu_custom_call.1} parent=39 // pred_check
          %p242 = pneg %p65
        $region46: #{tpu_custom_call.1} parent=39 // pred_check_branch
          %244 = sbr.rel (%p242) target = $region48
        $region47: #{tpu_custom_call.1} parent=39 // pred_region
          %245 = dma.done [#allocation7], 2048
        $region48: #{tpu_custom_call.1} parent=39 // pred_fallthru
          _
        // Predicated region
        $region49: #{tpu_custom_call.1} parent=39 // pred_check
          %p246 = pneg %p107
        $region50: #{tpu_custom_call.1} parent=39 // pred_check_branch
          %248 = sbr.rel (%p246) target = $region52
        $region51: #{tpu_custom_call.1} parent=39 // pred_region
          %249 = dma.done [#allocation7], 1024
        $region52: #{tpu_custom_call.1} parent=39 // pred_fallthru
          _
        %s250 = sand.u32 %s31, 1
        %s251 = scalar_lea.sflag [#allocation4], %s250
        %s252 = sand.u32 %s31, 1
        %s253 = smul.addr %s252, 16
        %s254 = scalar_lea.vmem [#allocation3], %s253
        %p255 = pneg %p44
        %p256 = pneg %p41
        %p257 = pneg %p65
        %p258 = pneg %p62
        %p259 = pneg %p86
        %p260 = pneg %p83
        %p261 = pneg %p107
        %p262 = pneg %p104
        %p263 = pneg %p128
        %p264 = pneg %p125
        %p265 = pneg %p154
        %p266 = pneg %p151
        %s267 = sand.u32 %s141, 1
        %s268 = scalar_lea.sflag [#allocation5], %s267
        %s269 = sand.u32 %s141, 1
        %s270 = smul.addr %s269, 16
        %s271 = scalar_lea.vmem [#allocation9], %s270
        %v272 = vld [vmem:[%s237] sm:$0xff]
        %v273 = vld [vmem:[%s237 + $0x8] sm:$0xff]
        %v274 = vld [vmem:[#allocation6] sm:$0xff]
        %v275 = vld [vmem:[#allocation6 + $0x8] sm:$0xff]
        %v276 = vld [vmem:[#allocation6 + $0x10] sm:$0xff]
        %v277 = vld [vmem:[#allocation6 + $0x18] sm:$0xff]
        %v278 = vld [vmem:[#allocation6 + $0x20] sm:$0xff]
        %v279 = vld [vmem:[#allocation6 + $0x28] sm:$0xff]
        %v280 = vld [vmem:[#allocation6 + $0x30] sm:$0xff]
        %v281 = vld [vmem:[#allocation6 + $0x38] sm:$0xff]
        %v282 = vld [vmem:[#allocation6 + $0x40] sm:$0xff]
        %v283 = vld [vmem:[#allocation6 + $0x48] sm:$0xff]
        %v284 = vld [vmem:[#allocation6 + $0x50] sm:$0xff]
        %v285 = vld [vmem:[#allocation6 + $0x58] sm:$0xff]
        %v286 = vld [vmem:[#allocation6 + $0x60] sm:$0xff]
        %v287 = vld [vmem:[#allocation6 + $0x68] sm:$0xff]
        %v288 = vld [vmem:[#allocation6 + $0x70] sm:$0xff]
        %v289 = vld [vmem:[#allocation6 + $0x78] sm:$0xff]
        %v290 = vld [vmem:[%s2] sm:$0x3]
        %v292 = vlaneseq
        %v293 = vshrl.u32 %v292, 7
        %v294 = vsub.s32 0, %v293
        %v295 = vrot.slane %v290, %v294
        %v296 = vlaneseq
        %v297 = vshrl.u32 %v296, 7
        %v298 = vsub.s32 1, %v297
        %v299 = vrot.slane %v290, %v298
        %vm302 = vcmask 523264
        %v304 = vsel %vm302, %v272, 0
        %v307 = vsel %vm302, %v273, 0
        %309 = vmatprep.subr.mxu0 %v275
        %310 = vmatpush1.msra.mxu0 %v274
        %311 = vmatprep.subr.mxu0 %v277
        %312 = vmatpush1.msra.mxu0 %v276
        %313 = vmatprep.subr.mxu0 %v279
        %314 = vmatpush1.msra.mxu0 %v278
        %315 = vmatprep.subr.mxu0 %v281
        %316 = vmatpush1.msra.mxu0 %v280
        %317 = vmatprep.subr.mxu0 %v283
        %318 = vmatpush1.msra.mxu0 %v282
        %319 = vmatprep.subr.mxu0 %v285
        %320 = vmatpush1.msra.mxu0 %v284
        %321 = vmatprep.subr.mxu0 %v287
        %322 = vmatpush1.msra.mxu0 %v286
        %323 = vmatprep.subr.mxu0 %v289
        %324 = vmatpush1.msra.mxu0 %v288
        %325 = vmatprep.subr.mxu0 0.0
        %326 = vmatpush1.msra.mxu0 0.0
        %327 = vmatprep.subr.mxu0 0.0
        %328 = vmatpush1.msra.mxu0 0.0
        %329 = vmatprep.subr.mxu0 0.0
        %330 = vmatpush1.msra.mxu0 0.0
        %331 = vmatprep.subr.mxu0 0.0
        %332 = vmatpush1.msra.mxu0 0.0
        %333 = vmatprep.subr.mxu0 0.0
        %334 = vmatpush1.msra.mxu0 0.0
        %335 = vmatprep.subr.mxu0 0.0
        %336 = vmatpush1.msra.mxu0 0.0
        %337 = vmatprep.subr.mxu0 0.0
        %338 = vmatpush1.msra.mxu0 0.0
        %339 = vmatprep.subr.mxu0 0.0
        %340 = vmatpush1.msra.mxu0 0.0
        %341 = vmatprep.subr.mxu0 0.0
        %342 = vmatpush1.msra.mxu0 0.0
        %343 = vmatprep.subr.mxu0 0.0
        %344 = vmatpush1.msra.mxu0 0.0
        %345 = vmatprep.subr.mxu0 0.0
        %346 = vmatpush1.msra.mxu0 0.0
        %347 = vmatprep.subr.mxu0 0.0
        %348 = vmatpush1.msra.mxu0 0.0
        %349 = vmatprep.subr.mxu0 0.0
        %350 = vmatpush1.msra.mxu0 0.0
        %351 = vmatprep.subr.mxu0 0.0
        %352 = vmatpush1.msra.mxu0 0.0
        %353 = vmatprep.subr.mxu0 0.0
        %354 = vmatpush1.msra.mxu0 0.0
        %355 = vmatprep.subr.mxu0 0.0
        %356 = vmatpush1.msra.mxu0 0.0
        %357 = vmatprep.subr.mxu0 0.0
        %358 = vmatpush1.msra.mxu0 0.0
        %359 = vmatprep.subr.mxu0 0.0
        %360 = vmatpush1.msra.mxu0 0.0
        %361 = vmatprep.subr.mxu0 0.0
        %362 = vmatpush1.msra.mxu0 0.0
        %363 = vmatprep.subr.mxu0 0.0
        %364 = vmatpush1.msra.mxu0 0.0
        %365 = vmatprep.subr.mxu0 0.0
        %366 = vmatpush1.msra.mxu0 0.0
        %367 = vmatprep.subr.mxu0 0.0
        %368 = vmatpush1.msra.mxu0 0.0
        %369 = vmatprep.subr.mxu0 0.0
        %370 = vmatpush1.msra.mxu0 0.0
        %371 = vmatprep.subr.mxu0 0.0
        %372 = vmatpush1.msra.mxu0 0.0
        %373 = vmatprep.mubr.f32.mxu0 0.0
        %374 = vmatmul.mubr.f32.gmra.mrb[0].mxu0 %v304
        %v375 = vpop.f32.mrb[0].mxu0
        %v376 = vadd.f32 %v295, %v375
        %v377 = vpop.f32.mrb[0].mxu0
        %v378 = vadd.f32 %v299, %v377
        %379 = vmatprep.mubr.f32.mxu0 0.0
        %380 = vmatmul.mubr.f32.gmra.mrb[0].mxu0 %v307
        %v381 = vpop.f32.mrb[0].mxu0
        %v382 = vadd.f32 %v295, %v381
        %v383 = vpop.f32.mrb[0].mxu0
        %v384 = vadd.f32 %v299, %v383
        %385 = vdwg.mxu0
        %388 = vrot.lane.b32.xlu0 %v376, 64
        %v389 = vpop.permute.xlu0 %388
        %390 = vrot.lane.b32.xlu0 %v382, 64
        %v391 = vpop.permute.xlu0 %390
        %vm392 = vcmask 64512
        %v393 = vsel %vm392, %v376, 0
        %v395 = vsel %vm392, %v382, 0
        %v397 = vsel %vm392, %v389, 0
        %v399 = vsel %vm392, %v391, 0
        %401 = vmatprep.subr.mxu0 0.0
        %402 = vmatpush1.xpose.msra.mxu0 %v397
        %403 = vmatprep.subr.mxu0 0.0
        %404 = vmatpush1.xpose.msra.mxu0 %v399
        %405 = vmatprep.subr.mxu0 0.0
        %406 = vmatpush1.xpose.msra.mxu0 0.0
        %407 = vmatprep.subr.mxu0 0.0
        %408 = vmatpush1.xpose.msra.mxu0 0.0
        %409 = vmatprep.subr.mxu0 0.0
        %410 = vmatpush1.xpose.msra.mxu0 0.0
        %411 = vmatprep.subr.mxu0 0.0
        %412 = vmatpush1.xpose.msra.mxu0 0.0
        %413 = vmatprep.subr.mxu0 0.0
        %414 = vmatpush1.xpose.msra.mxu0 0.0
        %415 = vmatprep.subr.mxu0 0.0
        %416 = vmatpush1.xpose.msra.mxu0 0.0
        %417 = vmatprep.subr.mxu0 0.0
        %418 = vmatpush1.xpose.msra.mxu0 0.0
        %419 = vmatprep.subr.mxu0 0.0
        %420 = vmatpush1.xpose.msra.mxu0 0.0
        %421 = vmatprep.subr.mxu0 0.0
        %422 = vmatpush1.xpose.msra.mxu0 0.0
        %423 = vmatprep.subr.mxu0 0.0
        %424 = vmatpush1.xpose.msra.mxu0 0.0
        %425 = vmatprep.subr.mxu0 0.0
        %426 = vmatpush1.xpose.msra.mxu0 0.0
        %427 = vmatprep.subr.mxu0 0.0
        %428 = vmatpush1.xpose.msra.mxu0 0.0
        %429 = vmatprep.subr.mxu0 0.0
        %430 = vmatpush1.xpose.msra.mxu0 0.0
        %431 = vmatprep.subr.mxu0 0.0
        %432 = vmatpush1.xpose.msra.mxu0 0.0
        %433 = vmatprep.subr.mxu0 0.0
        %434 = vmatpush1.xpose.msra.mxu0 0.0
        %435 = vmatprep.subr.mxu0 0.0
        %436 = vmatpush1.xpose.msra.mxu0 0.0
        %437 = vmatprep.subr.mxu0 0.0
        %438 = vmatpush1.xpose.msra.mxu0 0.0
        %439 = vmatprep.subr.mxu0 0.0
        %440 = vmatpush1.xpose.msra.mxu0 0.0
        %441 = vmatprep.subr.mxu0 0.0
        %442 = vmatpush1.xpose.msra.mxu0 0.0
        %443 = vmatprep.subr.mxu0 0.0
        %444 = vmatpush1.xpose.msra.mxu0 0.0
        %445 = vmatprep.subr.mxu0 0.0
        %446 = vmatpush1.xpose.msra.mxu0 0.0
        %447 = vmatprep.subr.mxu0 0.0
        %448 = vmatpush1.xpose.msra.mxu0 0.0
        %449 = vmatprep.subr.mxu0 0.0
        %450 = vmatpush1.xpose.msra.mxu0 0.0
        %451 = vmatprep.subr.mxu0 0.0
        %452 = vmatpush1.xpose.msra.mxu0 0.0
        %453 = vmatprep.subr.mxu0 0.0
        %454 = vmatpush1.xpose.msra.mxu0 0.0
        %455 = vmatprep.subr.mxu0 0.0
        %456 = vmatpush1.xpose.msra.mxu0 0.0
        %457 = vmatprep.subr.mxu0 0.0
        %458 = vmatpush1.xpose.msra.mxu0 0.0
        %459 = vmatprep.subr.mxu0 0.0
        %460 = vmatpush1.xpose.msra.mxu0 0.0
        %461 = vmatprep.subr.mxu0 0.0
        %462 = vmatpush1.xpose.msra.mxu0 0.0
        %463 = vmatprep.subr.mxu0 0.0
        %464 = vmatpush1.xpose.msra.mxu0 0.0
        %465 = vmatprep.mubr.f32.mxu0 0.0
        %466 = vmatmul.mubr.f32.gmra.mrb[0].mxu0 %v393
        %v467 = vpop.f32.mrb[0].mxu0
        %v468 = vadd.f32 0.0, %v467
        %v469 = vpop.f32.mrb[0].mxu0
        %470 = vmatprep.mubr.f32.mxu0 0.0
        %471 = vmatmul.mubr.f32.gmra.mrb[0].mxu0 %v395
        %v472 = vpop.f32.mrb[0].mxu0
        %v473 = vadd.f32 0.0, %v472
        %v474 = vpop.f32.mrb[0].mxu0
        %475 = vdwg.mxu0
        %v476 = vmul.f32 %v468, 0.35355338
        %v477 = vmul.f32 %v473, 0.35355338
        %vm478 = vcmask 130048
        %v479 = vsel %vm478, %v476, -inf
        %480 = vmax.xlane.f32.xlu0 %v479
        %v481 = vpop.xlane.xlu0 %480
        %v482 = vsel %vm478, %v477, -inf
        %483 = vmax.xlane.f32.xlu0 %v482
        %v484 = vpop.xlane.xlu0 %483
        %v485 = vsub.f32 %v476, %v481
        %v486 = vsub.f32 %v477, %v484
        %v487 = vmul.f32 %v485, 1.442695
        %v488 = vpow.pop %v487
        %v489 = vmul.f32 %v486, 1.442695
        %v490 = vpow.pop %v489
        %v491 = vsel %vm478, %v488, 0.0
        %492 = vadd.xlane.f32.xlu0 %v491
        %v493 = vpop.xlane.xlu0 %492
        %v494 = vsel %vm478, %v490, 0.0
        %495 = vadd.xlane.f32.xlu0 %v494
        %v496 = vpop.xlane.xlu0 %495
        %v498 = vsel %vm478, %v488, 0
        %v501 = vsel %vm478, %v490, 0
        %503 = vmatprep.subr.mxu0 0.0
        %504 = vmatpush1.msra.mxu0 %v378
        %505 = vmatprep.subr.mxu0 0.0
        %506 = vmatpush1.msra.mxu0 %v384
        %507 = vmatprep.subr.mxu0 0.0
        %508 = vmatpush1.msra.mxu0 0.0
        %509 = vmatprep.subr.mxu0 0.0
        %510 = vmatpush1.msra.mxu0 0.0
        %511 = vmatprep.subr.mxu0 0.0
        %512 = vmatpush1.msra.mxu0 0.0
        %513 = vmatprep.subr.mxu0 0.0
        %514 = vmatpush1.msra.mxu0 0.0
        %515 = vmatprep.subr.mxu0 0.0
        %516 = vmatpush1.msra.mxu0 0.0
        %517 = vmatprep.subr.mxu0 0.0
        %518 = vmatpush1.msra.mxu0 0.0
        %519 = vmatprep.subr.mxu0 0.0
        %520 = vmatpush1.msra.mxu0 0.0
        %521 = vmatprep.subr.mxu0 0.0
        %522 = vmatpush1.msra.mxu0 0.0
        %523 = vmatprep.subr.mxu0 0.0
        %524 = vmatpush1.msra.mxu0 0.0
        %525 = vmatprep.subr.mxu0 0.0
        %526 = vmatpush1.msra.mxu0 0.0
        %527 = vmatprep.subr.mxu0 0.0
        %528 = vmatpush1.msra.mxu0 0.0
        %529 = vmatprep.subr.mxu0 0.0
        %530 = vmatpush1.msra.mxu0 0.0
        %531 = vmatprep.subr.mxu0 0.0
        %532 = vmatpush1.msra.mxu0 0.0
        %533 = vmatprep.subr.mxu0 0.0
        %534 = vmatpush1.msra.mxu0 0.0
        %535 = vmatprep.subr.mxu0 0.0
        %536 = vmatpush1.msra.mxu0 0.0
        %537 = vmatprep.subr.mxu0 0.0
        %538 = vmatpush1.msra.mxu0 0.0
        %539 = vmatprep.subr.mxu0 0.0
        %540 = vmatpush1.msra.mxu0 0.0
        %541 = vmatprep.subr.mxu0 0.0
        %542 = vmatpush1.msra.mxu0 0.0
        %543 = vmatprep.subr.mxu0 0.0
        %544 = vmatpush1.msra.mxu0 0.0
        %545 = vmatprep.subr.mxu0 0.0
        %546 = vmatpush1.msra.mxu0 0.0
        %547 = vmatprep.subr.mxu0 0.0
        %548 = vmatpush1.msra.mxu0 0.0
        %549 = vmatprep.subr.mxu0 0.0
        %550 = vmatpush1.msra.mxu0 0.0
        %551 = vmatprep.subr.mxu0 0.0
        %552 = vmatpush1.msra.mxu0 0.0
        %553 = vmatprep.subr.mxu0 0.0
        %554 = vmatpush1.msra.mxu0 0.0
        %555 = vmatprep.subr.mxu0 0.0
        %556 = vmatpush1.msra.mxu0 0.0
        %557 = vmatprep.subr.mxu0 0.0
        %558 = vmatpush1.msra.mxu0 0.0
        %559 = vmatprep.subr.mxu0 0.0
        %560 = vmatpush1.msra.mxu0 0.0
        %561 = vmatprep.subr.mxu0 0.0
        %562 = vmatpush1.msra.mxu0 0.0
        %563 = vmatprep.subr.mxu0 0.0
        %564 = vmatpush1.msra.mxu0 0.0
        %565 = vmatprep.subr.mxu0 0.0
        %566 = vmatpush1.msra.mxu0 0.0
        %567 = vmatprep.mubr.f32.mxu0 0.0
        %568 = vmatmul.mubr.f32.gmra.mrb[0].mxu0 %v498
        %v569 = vpop.f32.mrb[0].mxu0
        %v570 = vadd.f32 0.0, %v569
        %v571 = vpop.f32.mrb[0].mxu0
        %572 = vmatprep.mubr.f32.mxu0 0.0
        %573 = vmatmul.mubr.f32.gmra.mrb[0].mxu0 %v501
        %v574 = vpop.f32.mrb[0].mxu0
        %v575 = vadd.f32 0.0, %v574
        %v576 = vpop.f32.mrb[0].mxu0
        %577 = vdwg.mxu0
        %v578 = vrcp.pop %v493
        %v579 = vmul.f32 %v570, %v578
        %v580 = vrcp.pop %v496
        %v581 = vmul.f32 %v575, %v580
        %582 = vst.msk [vmem:[#allocation2] sm:$0xff] %vm392, %v579
        %583 = vst.msk [vmem:[#allocation2 + $0x8] sm:$0xff] %vm392, %v581
        %584 = vrot.lane.b32.xlu0 %v376, 120
        %v585 = vpop.permute.xlu0 %584
        %586 = vrot.lane.b32.xlu0 %v382, 120
        %v587 = vpop.permute.xlu0 %586
        %588 = vrot.lane.b32.xlu0 %v376, 56
        %v589 = vpop.permute.xlu0 %588
        %590 = vrot.lane.b32.xlu0 %v382, 56
        %v591 = vpop.permute.xlu0 %590
        %v592 = vsel %vm392, %v585, 0
        %v594 = vsel %vm392, %v587, 0
        %v596 = vsel %vm392, %v589, 0
        %v598 = vsel %vm392, %v591, 0
        %600 = vmatprep.subr.mxu0 0.0
        %601 = vmatpush1.xpose.msra.mxu0 %v596
        %602 = vmatprep.subr.mxu0 0.0
        %603 = vmatpush1.xpose.msra.mxu0 %v598
        %604 = vmatprep.subr.mxu0 0.0
        %605 = vmatpush1.xpose.msra.mxu0 0.0
        %606 = vmatprep.subr.mxu0 0.0
        %607 = vmatpush1.xpose.msra.mxu0 0.0
        %608 = vmatprep.subr.mxu0 0.0
        %609 = vmatpush1.xpose.msra.mxu0 0.0
        %610 = vmatprep.subr.mxu0 0.0
        %611 = vmatpush1.xpose.msra.mxu0 0.0
        %612 = vmatprep.subr.mxu0 0.0
        %613 = vmatpush1.xpose.msra.mxu0 0.0
        %614 = vmatprep.subr.mxu0 0.0
        %615 = vmatpush1.xpose.msra.mxu0 0.0
        %616 = vmatprep.subr.mxu0 0.0
        %617 = vmatpush1.xpose.msra.mxu0 0.0
        %618 = vmatprep.subr.mxu0 0.0
        %619 = vmatpush1.xpose.msra.mxu0 0.0
        %620 = vmatprep.subr.mxu0 0.0
        %621 = vmatpush1.xpose.msra.mxu0 0.0
        %622 = vmatprep.subr.mxu0 0.0
        %623 = vmatpush1.xpose.msra.mxu0 0.0
        %624 = vmatprep.subr.mxu0 0.0
        %625 = vmatpush1.xpose.msra.mxu0 0.0
        %626 = vmatprep.subr.mxu0 0.0
        %627 = vmatpush1.xpose.msra.mxu0 0.0
        %628 = vmatprep.subr.mxu0 0.0
        %629 = vmatpush1.xpose.msra.mxu0 0.0
        %630 = vmatprep.subr.mxu0 0.0
        %631 = vmatpush1.xpose.msra.mxu0 0.0
        %632 = vmatprep.subr.mxu0 0.0
        %633 = vmatpush1.xpose.msra.mxu0 0.0
        %634 = vmatprep.subr.mxu0 0.0
        %635 = vmatpush1.xpose.msra.mxu0 0.0
        %636 = vmatprep.subr.mxu0 0.0
        %637 = vmatpush1.xpose.msra.mxu0 0.0
        %638 = vmatprep.subr.mxu0 0.0
        %639 = vmatpush1.xpose.msra.mxu0 0.0
        %640 = vmatprep.subr.mxu0 0.0
        %641 = vmatpush1.xpose.msra.mxu0 0.0
        %642 = vmatprep.subr.mxu0 0.0
        %643 = vmatpush1.xpose.msra.mxu0 0.0
        %644 = vmatprep.subr.mxu0 0.0
        %645 = vmatpush1.xpose.msra.mxu0 0.0
        %646 = vmatprep.subr.mxu0 0.0
        %647 = vmatpush1.xpose.msra.mxu0 0.0
        %648 = vmatprep.subr.mxu0 0.0
        %649 = vmatpush1.xpose.msra.mxu0 0.0
        %650 = vmatprep.subr.mxu0 0.0
        %651 = vmatpush1.xpose.msra.mxu0 0.0
        %652 = vmatprep.subr.mxu0 0.0
        %653 = vmatpush1.xpose.msra.mxu0 0.0
        %654 = vmatprep.subr.mxu0 0.0
        %655 = vmatpush1.xpose.msra.mxu0 0.0
        %656 = vmatprep.subr.mxu0 0.0
        %657 = vmatpush1.xpose.msra.mxu0 0.0
        %658 = vmatprep.subr.mxu0 0.0
        %659 = vmatpush1.xpose.msra.mxu0 0.0
        %660 = vmatprep.subr.mxu0 0.0
        %661 = vmatpush1.xpose.msra.mxu0 0.0
        %662 = vmatprep.subr.mxu0 0.0
        %663 = vmatpush1.xpose.msra.mxu0 0.0
        %664 = vmatprep.mubr.f32.mxu0 0.0
        %665 = vmatmul.mubr.f32.gmra.mrb[0].mxu0 %v592
        %v666 = vpop.f32.mrb[0].mxu0
        %v667 = vadd.f32 0.0, %v666
        %v668 = vpop.f32.mrb[0].mxu0
        %669 = vmatprep.mubr.f32.mxu0 0.0
        %670 = vmatmul.mubr.f32.gmra.mrb[0].mxu0 %v594
        %v671 = vpop.f32.mrb[0].mxu0
        %v672 = vadd.f32 0.0, %v671
        %v673 = vpop.f32.mrb[0].mxu0
        %674 = vdwg.mxu0
        %v675 = vmul.f32 %v667, 0.35355338
        %v676 = vmul.f32 %v672, 0.35355338
        %v677 = vsel %vm478, %v675, -inf
        %678 = vmax.xlane.f32.xlu0 %v677
        %v679 = vpop.xlane.xlu0 %678
        %v680 = vsel %vm478, %v676, -inf
        %681 = vmax.xlane.f32.xlu0 %v680
        %v682 = vpop.xlane.xlu0 %681
        %v683 = vsub.f32 %v675, %v679
        %v684 = vsub.f32 %v676, %v682
        %v685 = vmul.f32 %v683, 1.442695
        %v686 = vpow.pop %v685
        %v687 = vmul.f32 %v684, 1.442695
        %v688 = vpow.pop %v687
        %v689 = vsel %vm478, %v686, 0.0
        %690 = vadd.xlane.f32.xlu0 %v689
        %v691 = vpop.xlane.xlu0 %690
        %v692 = vsel %vm478, %v688, 0.0
        %693 = vadd.xlane.f32.xlu0 %v692
        %v694 = vpop.xlane.xlu0 %693
        %697 = vrot.lane.b32.xlu0 %v378, 120
        %v698 = vpop.permute.xlu0 %697
        %699 = vrot.lane.b32.xlu0 %v384, 120
        %v700 = vpop.permute.xlu0 %699
        %v704 = vsel %vm478, %v686, 0
        %v707 = vsel %vm478, %v688, 0
        %709 = vmatprep.subr.mxu0 0.0
        %710 = vmatpush1.msra.mxu0 %v698
        %711 = vmatprep.subr.mxu0 0.0
        %712 = vmatpush1.msra.mxu0 %v700
        %713 = vmatprep.subr.mxu0 0.0
        %714 = vmatpush1.msra.mxu0 0.0
        %715 = vmatprep.subr.mxu0 0.0
        %716 = vmatpush1.msra.mxu0 0.0
        %717 = vmatprep.subr.mxu0 0.0
        %718 = vmatpush1.msra.mxu0 0.0
        %719 = vmatprep.subr.mxu0 0.0
        %720 = vmatpush1.msra.mxu0 0.0
        %721 = vmatprep.subr.mxu0 0.0
        %722 = vmatpush1.msra.mxu0 0.0
        %723 = vmatprep.subr.mxu0 0.0
        %724 = vmatpush1.msra.mxu0 0.0
        %725 = vmatprep.subr.mxu0 0.0
        %726 = vmatpush1.msra.mxu0 0.0
        %727 = vmatprep.subr.mxu0 0.0
        %728 = vmatpush1.msra.mxu0 0.0
        %729 = vmatprep.subr.mxu0 0.0
        %730 = vmatpush1.msra.mxu0 0.0
        %731 = vmatprep.subr.mxu0 0.0
        %732 = vmatpush1.msra.mxu0 0.0
        %733 = vmatprep.subr.mxu0 0.0
        %734 = vmatpush1.msra.mxu0 0.0
        %735 = vmatprep.subr.mxu0 0.0
        %736 = vmatpush1.msra.mxu0 0.0
        %737 = vmatprep.subr.mxu0 0.0
        %738 = vmatpush1.msra.mxu0 0.0
        %739 = vmatprep.subr.mxu0 0.0
        %740 = vmatpush1.msra.mxu0 0.0
        %741 = vmatprep.subr.mxu0 0.0
        %742 = vmatpush1.msra.mxu0 0.0
        %743 = vmatprep.subr.mxu0 0.0
        %744 = vmatpush1.msra.mxu0 0.0
        %745 = vmatprep.subr.mxu0 0.0
        %746 = vmatpush1.msra.mxu0 0.0
        %747 = vmatprep.subr.mxu0 0.0
        %748 = vmatpush1.msra.mxu0 0.0
        %749 = vmatprep.subr.mxu0 0.0
        %750 = vmatpush1.msra.mxu0 0.0
        %751 = vmatprep.subr.mxu0 0.0
        %752 = vmatpush1.msra.mxu0 0.0
        %753 = vmatprep.subr.mxu0 0.0
        %754 = vmatpush1.msra.mxu0 0.0
        %755 = vmatprep.subr.mxu0 0.0
        %756 = vmatpush1.msra.mxu0 0.0
        %757 = vmatprep.subr.mxu0 0.0
        %758 = vmatpush1.msra.mxu0 0.0
        %759 = vmatprep.subr.mxu0 0.0
        %760 = vmatpush1.msra.mxu0 0.0
        %761 = vmatprep.subr.mxu0 0.0
        %762 = vmatpush1.msra.mxu0 0.0
        %763 = vmatprep.subr.mxu0 0.0
        %764 = vmatpush1.msra.mxu0 0.0
        %765 = vmatprep.subr.mxu0 0.0
        %766 = vmatpush1.msra.mxu0 0.0
        %767 = vmatprep.subr.mxu0 0.0
        %768 = vmatpush1.msra.mxu0 0.0
        %769 = vmatprep.subr.mxu0 0.0
        %770 = vmatpush1.msra.mxu0 0.0
        %771 = vmatprep.subr.mxu0 0.0
        %772 = vmatpush1.msra.mxu0 0.0
        %773 = vmatprep.mubr.f32.mxu0 0.0
        %774 = vmatmul.mubr.f32.gmra.mrb[0].mxu0 %v704
        %v775 = vpop.f32.mrb[0].mxu0
        %v776 = vadd.f32 0.0, %v775
        %v777 = vpop.f32.mrb[0].mxu0
        %778 = vmatprep.mubr.f32.mxu0 0.0
        %779 = vmatmul.mubr.f32.gmra.mrb[0].mxu0 %v707
        %v780 = vpop.f32.mrb[0].mxu0
        %v781 = vadd.f32 0.0, %v780
        %v782 = vpop.f32.mrb[0].mxu0
        %783 = vdwg.mxu0
        %v784 = vrcp.pop %v691
        %v785 = vmul.f32 %v776, %v784
        %v786 = vrcp.pop %v694
        %v787 = vmul.f32 %v781, %v786
        %790 = vrot.lane.b32.xlu0 %v785, 8
        %v791 = vpop.permute.xlu0 %790
        %792 = vrot.lane.b32.xlu0 %v787, 8
        %v793 = vpop.permute.xlu0 %792
        %vm796 = vcmask 130112
        %797 = vst.msk [vmem:[#allocation2] sm:$0xff] %vm796, %v791
        %798 = vst.msk [vmem:[#allocation2 + $0x8] sm:$0xff] %vm796, %v793
        %799 = vrot.lane.b32.xlu0 %v376, 112
        %v800 = vpop.permute.xlu0 %799
        %801 = vrot.lane.b32.xlu0 %v382, 112
        %v802 = vpop.permute.xlu0 %801
        %803 = vrot.lane.b32.xlu0 %v376, 48
        %v804 = vpop.permute.xlu0 %803
        %805 = vrot.lane.b32.xlu0 %v382, 48
        %v806 = vpop.permute.xlu0 %805
        %v807 = vsel %vm392, %v800, 0
        %v809 = vsel %vm392, %v802, 0
        %v811 = vsel %vm392, %v804, 0
        %v813 = vsel %vm392, %v806, 0
        %815 = vmatprep.subr.mxu0 0.0
        %816 = vmatpush1.xpose.msra.mxu0 %v811
        %817 = vmatprep.subr.mxu0 0.0
        %818 = vmatpush1.xpose.msra.mxu0 %v813
        %819 = vmatprep.subr.mxu0 0.0
        %820 = vmatpush1.xpose.msra.mxu0 0.0
        %821 = vmatprep.subr.mxu0 0.0
        %822 = vmatpush1.xpose.msra.mxu0 0.0
        %823 = vmatprep.subr.mxu0 0.0
        %824 = vmatpush1.xpose.msra.mxu0 0.0
        %825 = vmatprep.subr.mxu0 0.0
        %826 = vmatpush1.xpose.msra.mxu0 0.0
        %827 = vmatprep.subr.mxu0 0.0
        %828 = vmatpush1.xpose.msra.mxu0 0.0
        %829 = vmatprep.subr.mxu0 0.0
        %830 = vmatpush1.xpose.msra.mxu0 0.0
        %831 = vmatprep.subr.mxu0 0.0
        %832 = vmatpush1.xpose.msra.mxu0 0.0
        %833 = vmatprep.subr.mxu0 0.0
        %834 = vmatpush1.xpose.msra.mxu0 0.0
        %835 = vmatprep.subr.mxu0 0.0
        %836 = vmatpush1.xpose.msra.mxu0 0.0
        %837 = vmatprep.subr.mxu0 0.0
        %838 = vmatpush1.xpose.msra.mxu0 0.0
        %839 = vmatprep.subr.mxu0 0.0
        %840 = vmatpush1.xpose.msra.mxu0 0.0
        %841 = vmatprep.subr.mxu0 0.0
        %842 = vmatpush1.xpose.msra.mxu0 0.0
        %843 = vmatprep.subr.mxu0 0.0
        %844 = vmatpush1.xpose.msra.mxu0 0.0
        %845 = vmatprep.subr.mxu0 0.0
        %846 = vmatpush1.xpose.msra.mxu0 0.0
        %847 = vmatprep.subr.mxu0 0.0
        %848 = vmatpush1.xpose.msra.mxu0 0.0
        %849 = vmatprep.subr.mxu0 0.0
        %850 = vmatpush1.xpose.msra.mxu0 0.0
        %851 = vmatprep.subr.mxu0 0.0
        %852 = vmatpush1.xpose.msra.mxu0 0.0
        %853 = vmatprep.subr.mxu0 0.0
        %854 = vmatpush1.xpose.msra.mxu0 0.0
        %855 = vmatprep.subr.mxu0 0.0
        %856 = vmatpush1.xpose.msra.mxu0 0.0
        %857 = vmatprep.subr.mxu0 0.0
        %858 = vmatpush1.xpose.msra.mxu0 0.0
        %859 = vmatprep.subr.mxu0 0.0
        %860 = vmatpush1.xpose.msra.mxu0 0.0
        %861 = vmatprep.subr.mxu0 0.0
        %862 = vmatpush1.xpose.msra.mxu0 0.0
        %863 = vmatprep.subr.mxu0 0.0
        %864 = vmatpush1.xpose.msra.mxu0 0.0
        %865 = vmatprep.subr.mxu0 0.0
        %866 = vmatpush1.xpose.msra.mxu0 0.0
        %867 = vmatprep.subr.mxu0 0.0
        %868 = vmatpush1.xpose.msra.mxu0 0.0
        %869 = vmatprep.subr.mxu0 0.0
        %870 = vmatpush1.xpose.msra.mxu0 0.0
        %871 = vmatprep.subr.mxu0 0.0
        %872 = vmatpush1.xpose.msra.mxu0 0.0
        %873 = vmatprep.subr.mxu0 0.0
        %874 = vmatpush1.xpose.msra.mxu0 0.0
        %875 = vmatprep.subr.mxu0 0.0
        %876 = vmatpush1.xpose.msra.mxu0 0.0
        %877 = vmatprep.subr.mxu0 0.0
        %878 = vmatpush1.xpose.msra.mxu0 0.0
        %879 = vmatprep.mubr.f32.mxu0 0.0
        %880 = vmatmul.mubr.f32.gmra.mrb[0].mxu0 %v807
        %v881 = vpop.f32.mrb[0].mxu0
        %v882 = vadd.f32 0.0, %v881
        %v883 = vpop.f32.mrb[0].mxu0
        %884 = vmatprep.mubr.f32.mxu0 0.0
        %885 = vmatmul.mubr.f32.gmra.mrb[0].mxu0 %v809
        %v886 = vpop.f32.mrb[0].mxu0
        %v887 = vadd.f32 0.0, %v886
        %v888 = vpop.f32.mrb[0].mxu0
        %889 = vdwg.mxu0
        %v890 = vmul.f32 %v882, 0.35355338
        %v891 = vmul.f32 %v887, 0.35355338
        %v892 = vsel %vm478, %v890, -inf
        %893 = vmax.xlane.f32.xlu0 %v892
        %v894 = vpop.xlane.xlu0 %893
        %v895 = vsel %vm478, %v891, -inf
        %896 = vmax.xlane.f32.xlu0 %v895
        %v897 = vpop.xlane.xlu0 %896
        %v898 = vsub.f32 %v890, %v894
        %v899 = vsub.f32 %v891, %v897
        %v900 = vmul.f32 %v898, 1.442695
        %v901 = vpow.pop %v900
        %v902 = vmul.f32 %v899, 1.442695
        %v903 = vpow.pop %v902
        %v904 = vsel %vm478, %v901, 0.0
        %905 = vadd.xlane.f32.xlu0 %v904
        %v906 = vpop.xlane.xlu0 %905
        %v907 = vsel %vm478, %v903, 0.0
        %908 = vadd.xlane.f32.xlu0 %v907
        %v909 = vpop.xlane.xlu0 %908
        %910 = vrot.lane.b32.xlu0 %v378, 112
        %v911 = vpop.permute.xlu0 %910
        %912 = vrot.lane.b32.xlu0 %v384, 112
        %v913 = vpop.permute.xlu0 %912
        %v917 = vsel %vm478, %v901, 0
        %v920 = vsel %vm478, %v903, 0
        %922 = vmatprep.subr.mxu0 0.0
        %923 = vmatpush1.msra.mxu0 %v911
        %924 = vmatprep.subr.mxu0 0.0
        %925 = vmatpush1.msra.mxu0 %v913
        %926 = vmatprep.subr.mxu0 0.0
        %927 = vmatpush1.msra.mxu0 0.0
        %928 = vmatprep.subr.mxu0 0.0
        %929 = vmatpush1.msra.mxu0 0.0
        %930 = vmatprep.subr.mxu0 0.0
        %931 = vmatpush1.msra.mxu0 0.0
        %932 = vmatprep.subr.mxu0 0.0
        %933 = vmatpush1.msra.mxu0 0.0
        %934 = vmatprep.subr.mxu0 0.0
        %935 = vmatpush1.msra.mxu0 0.0
        %936 = vmatprep.subr.mxu0 0.0
        %937 = vmatpush1.msra.mxu0 0.0
        %938 = vmatprep.subr.mxu0 0.0
        %939 = vmatpush1.msra.mxu0 0.0
        %940 = vmatprep.subr.mxu0 0.0
        %941 = vmatpush1.msra.mxu0 0.0
        %942 = vmatprep.subr.mxu0 0.0
        %943 = vmatpush1.msra.mxu0 0.0
        %944 = vmatprep.subr.mxu0 0.0
        %945 = vmatpush1.msra.mxu0 0.0
        %946 = vmatprep.subr.mxu0 0.0
        %947 = vmatpush1.msra.mxu0 0.0
        %948 = vmatprep.subr.mxu0 0.0
        %949 = vmatpush1.msra.mxu0 0.0
        %950 = vmatprep.subr.mxu0 0.0
        %951 = vmatpush1.msra.mxu0 0.0
        %952 = vmatprep.subr.mxu0 0.0
        %953 = vmatpush1.msra.mxu0 0.0
        %954 = vmatprep.subr.mxu0 0.0
        %955 = vmatpush1.msra.mxu0 0.0
        %956 = vmatprep.subr.mxu0 0.0
        %957 = vmatpush1.msra.mxu0 0.0
        %958 = vmatprep.subr.mxu0 0.0
        %959 = vmatpush1.msra.mxu0 0.0
        %960 = vmatprep.subr.mxu0 0.0
        %961 = vmatpush1.msra.mxu0 0.0
        %962 = vmatprep.subr.mxu0 0.0
        %963 = vmatpush1.msra.mxu0 0.0
        %964 = vmatprep.subr.mxu0 0.0
        %965 = vmatpush1.msra.mxu0 0.0
        %966 = vmatprep.subr.mxu0 0.0
        %967 = vmatpush1.msra.mxu0 0.0
        %968 = vmatprep.subr.mxu0 0.0
        %969 = vmatpush1.msra.mxu0 0.0
        %970 = vmatprep.subr.mxu0 0.0
        %971 = vmatpush1.msra.mxu0 0.0
        %972 = vmatprep.subr.mxu0 0.0
        %973 = vmatpush1.msra.mxu0 0.0
        %974 = vmatprep.subr.mxu0 0.0
        %975 = vmatpush1.msra.mxu0 0.0
        %976 = vmatprep.subr.mxu0 0.0
        %977 = vmatpush1.msra.mxu0 0.0
        %978 = vmatprep.subr.mxu0 0.0
        %979 = vmatpush1.msra.mxu0 0.0
        %980 = vmatprep.subr.mxu0 0.0
        %981 = vmatpush1.msra.mxu0 0.0
        %982 = vmatprep.subr.mxu0 0.0
        %983 = vmatpush1.msra.mxu0 0.0
        %984 = vmatprep.subr.mxu0 0.0
        %985 = vmatpush1.msra.mxu0 0.0
        %986 = vmatprep.mubr.f32.mxu0 0.0
        %987 = vmatmul.mubr.f32.gmra.mrb[0].mxu0 %v917
        %v988 = vpop.f32.mrb[0].mxu0
        %v989 = vadd.f32 0.0, %v988
        %v990 = vpop.f32.mrb[0].mxu0
        %991 = vmatprep.mubr.f32.mxu0 0.0
        %992 = vmatmul.mubr.f32.gmra.mrb[0].mxu0 %v920
        %v993 = vpop.f32.mrb[0].mxu0
        %v994 = vadd.f32 0.0, %v993
        %v995 = vpop.f32.mrb[0].mxu0
        %996 = vdwg.mxu0
        %v997 = vrcp.pop %v906
        %v998 = vmul.f32 %v989, %v997
        %v999 = vrcp.pop %v909
        %v1000 = vmul.f32 %v994, %v999
        %1003 = vrot.lane.b32.xlu0 %v998, 16
        %v1004 = vpop.permute.xlu0 %1003
        %1005 = vrot.lane.b32.xlu0 %v1000, 16
        %v1006 = vpop.permute.xlu0 %1005
        %vm1009 = vcmask 195712
        %1010 = vst.msk [vmem:[#allocation2] sm:$0xff] %vm1009, %v1004
        %1011 = vst.msk [vmem:[#allocation2 + $0x8] sm:$0xff] %vm1009, %v1006
        %1012 = vrot.lane.b32.xlu0 %v376, 104
        %v1013 = vpop.permute.xlu0 %1012
        %1014 = vrot.lane.b32.xlu0 %v382, 104
        %v1015 = vpop.permute.xlu0 %1014
        %1016 = vrot.lane.b32.xlu0 %v376, 40
        %v1017 = vpop.permute.xlu0 %1016
        %1018 = vrot.lane.b32.xlu0 %v382, 40
        %v1019 = vpop.permute.xlu0 %1018
        %v1020 = vsel %vm392, %v1013, 0
        %v1022 = vsel %vm392, %v1015, 0
        %v1024 = vsel %vm392, %v1017, 0
        %v1026 = vsel %vm392, %v1019, 0
        %1028 = vmatprep.subr.mxu0 0.0
        %1029 = vmatpush1.xpose.msra.mxu0 %v1024
        %1030 = vmatprep.subr.mxu0 0.0
        %1031 = vmatpush1.xpose.msra.mxu0 %v1026
        %1032 = vmatprep.subr.mxu0 0.0
        %1033 = vmatpush1.xpose.msra.mxu0 0.0
        %1034 = vmatprep.subr.mxu0 0.0
        %1035 = vmatpush1.xpose.msra.mxu0 0.0
        %1036 = vmatprep.subr.mxu0 0.0
        %1037 = vmatpush1.xpose.msra.mxu0 0.0
        %1038 = vmatprep.subr.mxu0 0.0
        %1039 = vmatpush1.xpose.msra.mxu0 0.0
        %1040 = vmatprep.subr.mxu0 0.0
        %1041 = vmatpush1.xpose.msra.mxu0 0.0
        %1042 = vmatprep.subr.mxu0 0.0
        %1043 = vmatpush1.xpose.msra.mxu0 0.0
        %1044 = vmatprep.subr.mxu0 0.0
        %1045 = vmatpush1.xpose.msra.mxu0 0.0
        %1046 = vmatprep.subr.mxu0 0.0
        %1047 = vmatpush1.xpose.msra.mxu0 0.0
        %1048 = vmatprep.subr.mxu0 0.0
        %1049 = vmatpush1.xpose.msra.mxu0 0.0
        %1050 = vmatprep.subr.mxu0 0.0
        %1051 = vmatpush1.xpose.msra.mxu0 0.0
        %1052 = vmatprep.subr.mxu0 0.0
        %1053 = vmatpush1.xpose.msra.mxu0 0.0
        %1054 = vmatprep.subr.mxu0 0.0
        %1055 = vmatpush1.xpose.msra.mxu0 0.0
        %1056 = vmatprep.subr.mxu0 0.0
        %1057 = vmatpush1.xpose.msra.mxu0 0.0
        %1058 = vmatprep.subr.mxu0 0.0
        %1059 = vmatpush1.xpose.msra.mxu0 0.0
        %1060 = vmatprep.subr.mxu0 0.0
        %1061 = vmatpush1.xpose.msra.mxu0 0.0
        %1062 = vmatprep.subr.mxu0 0.0
        %1063 = vmatpush1.xpose.msra.mxu0 0.0
        %1064 = vmatprep.subr.mxu0 0.0
        %1065 = vmatpush1.xpose.msra.mxu0 0.0
        %1066 = vmatprep.subr.mxu0 0.0
        %1067 = vmatpush1.xpose.msra.mxu0 0.0
        %1068 = vmatprep.subr.mxu0 0.0
        %1069 = vmatpush1.xpose.msra.mxu0 0.0
        %1070 = vmatprep.subr.mxu0 0.0
        %1071 = vmatpush1.xpose.msra.mxu0 0.0
        %1072 = vmatprep.subr.mxu0 0.0
        %1073 = vmatpush1.xpose.msra.mxu0 0.0
        %1074 = vmatprep.subr.mxu0 0.0
        %1075 = vmatpush1.xpose.msra.mxu0 0.0
        %1076 = vmatprep.subr.mxu0 0.0
        %1077 = vmatpush1.xpose.msra.mxu0 0.0
        %1078 = vmatprep.subr.mxu0 0.0
        %1079 = vmatpush1.xpose.msra.mxu0 0.0
        %1080 = vmatprep.subr.mxu0 0.0
        %1081 = vmatpush1.xpose.msra.mxu0 0.0
        %1082 = vmatprep.subr.mxu0 0.0
        %1083 = vmatpush1.xpose.msra.mxu0 0.0
        %1084 = vmatprep.subr.mxu0 0.0
        %1085 = vmatpush1.xpose.msra.mxu0 0.0
        %1086 = vmatprep.subr.mxu0 0.0
        %1087 = vmatpush1.xpose.msra.mxu0 0.0
        %1088 = vmatprep.subr.mxu0 0.0
        %1089 = vmatpush1.xpose.msra.mxu0 0.0
        %1090 = vmatprep.subr.mxu0 0.0
        %1091 = vmatpush1.xpose.msra.mxu0 0.0
        %1092 = vmatprep.mubr.f32.mxu0 0.0
        %1093 = vmatmul.mubr.f32.gmra.mrb[0].mxu0 %v1020
        %v1094 = vpop.f32.mrb[0].mxu0
        %v1095 = vadd.f32 0.0, %v1094
        %v1096 = vpop.f32.mrb[0].mxu0
        %1097 = vmatprep.mubr.f32.mxu0 0.0
        %1098 = vmatmul.mubr.f32.gmra.mrb[0].mxu0 %v1022
        %v1099 = vpop.f32.mrb[0].mxu0
        %v1100 = vadd.f32 0.0, %v1099
        %v1101 = vpop.f32.mrb[0].mxu0
        %1102 = vdwg.mxu0
        %v1103 = vmul.f32 %v1095, 0.35355338
        %v1104 = vmul.f32 %v1100, 0.35355338
        %v1105 = vsel %vm478, %v1103, -inf
        %1106 = vmax.xlane.f32.xlu0 %v1105
        %v1107 = vpop.xlane.xlu0 %1106
        %v1108 = vsel %vm478, %v1104, -inf
        %1109 = vmax.xlane.f32.xlu0 %v1108
        %v1110 = vpop.xlane.xlu0 %1109
        %v1111 = vsub.f32 %v1103, %v1107
        %v1112 = vsub.f32 %v1104, %v1110
        %v1113 = vmul.f32 %v1111, 1.442695
        %v1114 = vpow.pop %v1113
        %v1115 = vmul.f32 %v1112, 1.442695
        %v1116 = vpow.pop %v1115
        %v1117 = vsel %vm478, %v1114, 0.0
        %1118 = vadd.xlane.f32.xlu0 %v1117
        %v1119 = vpop.xlane.xlu0 %1118
        %v1120 = vsel %vm478, %v1116, 0.0
        %1121 = vadd.xlane.f32.xlu0 %v1120
        %v1122 = vpop.xlane.xlu0 %1121
        %1123 = vrot.lane.b32.xlu0 %v378, 104
        %v1124 = vpop.permute.xlu0 %1123
        %1125 = vrot.lane.b32.xlu0 %v384, 104
        %v1126 = vpop.permute.xlu0 %1125
        %v1130 = vsel %vm478, %v1114, 0
        %v1133 = vsel %vm478, %v1116, 0
        %1135 = vmatprep.subr.mxu0 0.0
        %1136 = vmatpush1.msra.mxu0 %v1124
        %1137 = vmatprep.subr.mxu0 0.0
        %1138 = vmatpush1.msra.mxu0 %v1126
        %1139 = vmatprep.subr.mxu0 0.0
        %1140 = vmatpush1.msra.mxu0 0.0
        %1141 = vmatprep.subr.mxu0 0.0
        %1142 = vmatpush1.msra.mxu0 0.0
        %1143 = vmatprep.subr.mxu0 0.0
        %1144 = vmatpush1.msra.mxu0 0.0
        %1145 = vmatprep.subr.mxu0 0.0
        %1146 = vmatpush1.msra.mxu0 0.0
        %1147 = vmatprep.subr.mxu0 0.0
        %1148 = vmatpush1.msra.mxu0 0.0
        %1149 = vmatprep.subr.mxu0 0.0
        %1150 = vmatpush1.msra.mxu0 0.0
        %1151 = vmatprep.subr.mxu0 0.0
        %1152 = vmatpush1.msra.mxu0 0.0
        %1153 = vmatprep.subr.mxu0 0.0
        %1154 = vmatpush1.msra.mxu0 0.0
        %1155 = vmatprep.subr.mxu0 0.0
        %1156 = vmatpush1.msra.mxu0 0.0
        %1157 = vmatprep.subr.mxu0 0.0
        %1158 = vmatpush1.msra.mxu0 0.0
        %1159 = vmatprep.subr.mxu0 0.0
        %1160 = vmatpush1.msra.mxu0 0.0
        %1161 = vmatprep.subr.mxu0 0.0
        %1162 = vmatpush1.msra.mxu0 0.0
        %1163 = vmatprep.subr.mxu0 0.0
        %1164 = vmatpush1.msra.mxu0 0.0
        %1165 = vmatprep.subr.mxu0 0.0
        %1166 = vmatpush1.msra.mxu0 0.0
        %1167 = vmatprep.subr.mxu0 0.0
        %1168 = vmatpush1.msra.mxu0 0.0
        %1169 = vmatprep.subr.mxu0 0.0
        %1170 = vmatpush1.msra.mxu0 0.0
        %1171 = vmatprep.subr.mxu0 0.0
        %1172 = vmatpush1.msra.mxu0 0.0
        %1173 = vmatprep.subr.mxu0 0.0
        %1174 = vmatpush1.msra.mxu0 0.0
        %1175 = vmatprep.subr.mxu0 0.0
        %1176 = vmatpush1.msra.mxu0 0.0
        %1177 = vmatprep.subr.mxu0 0.0
        %1178 = vmatpush1.msra.mxu0 0.0
        %1179 = vmatprep.subr.mxu0 0.0
        %1180 = vmatpush1.msra.mxu0 0.0
        %1181 = vmatprep.subr.mxu0 0.0
        %1182 = vmatpush1.msra.mxu0 0.0
        %1183 = vmatprep.subr.mxu0 0.0
        %1184 = vmatpush1.msra.mxu0 0.0
        %1185 = vmatprep.subr.mxu0 0.0
        %1186 = vmatpush1.msra.mxu0 0.0
        %1187 = vmatprep.subr.mxu0 0.0
        %1188 = vmatpush1.msra.mxu0 0.0
        %1189 = vmatprep.subr.mxu0 0.0
        %1190 = vmatpush1.msra.mxu0 0.0
        %1191 = vmatprep.subr.mxu0 0.0
        %1192 = vmatpush1.msra.mxu0 0.0
        %1193 = vmatprep.subr.mxu0 0.0
        %1194 = vmatpush1.msra.mxu0 0.0
        %1195 = vmatprep.subr.mxu0 0.0
        %1196 = vmatpush1.msra.mxu0 0.0
        %1197 = vmatprep.subr.mxu0 0.0
        %1198 = vmatpush1.msra.mxu0 0.0
        %1199 = vmatprep.mubr.f32.mxu0 0.0
        %1200 = vmatmul.mubr.f32.gmra.mrb[0].mxu0 %v1130
        %v1201 = vpop.f32.mrb[0].mxu0
        %v1202 = vadd.f32 0.0, %v1201
        %v1203 = vpop.f32.mrb[0].mxu0
        %1204 = vmatprep.mubr.f32.mxu0 0.0
        %1205 = vmatmul.mubr.f32.gmra.mrb[0].mxu0 %v1133
        %v1206 = vpop.f32.mrb[0].mxu0
        %v1207 = vadd.f32 0.0, %v1206
        %v1208 = vpop.f32.mrb[0].mxu0
        %1209 = vdwg.mxu0
        %v1210 = vrcp.pop %v1119
        %v1211 = vmul.f32 %v1202, %v1210
        %v1212 = vrcp.pop %v1122
        %v1213 = vmul.f32 %v1207, %v1212
        %1216 = vrot.lane.b32.xlu0 %v1211, 24
        %v1217 = vpop.permute.xlu0 %1216
        %1218 = vrot.lane.b32.xlu0 %v1213, 24
        %v1219 = vpop.permute.xlu0 %1218
        %vm1222 = vcmask 261312
        %1223 = vst.msk [vmem:[#allocation2] sm:$0xff] %vm1222, %v1217
        %1224 = vst.msk [vmem:[#allocation2 + $0x8] sm:$0xff] %vm1222, %v1219
        %1225 = vrot.lane.b32.xlu0 %v376, 96
        %v1226 = vpop.permute.xlu0 %1225
        %1227 = vrot.lane.b32.xlu0 %v382, 96
        %v1228 = vpop.permute.xlu0 %1227
        %1229 = vrot.lane.b32.xlu0 %v376, 32
        %v1230 = vpop.permute.xlu0 %1229
        %1231 = vrot.lane.b32.xlu0 %v382, 32
        %v1232 = vpop.permute.xlu0 %1231
        %v1233 = vsel %vm392, %v1226, 0
        %v1235 = vsel %vm392, %v1228, 0
        %v1237 = vsel %vm392, %v1230, 0
        %v1239 = vsel %vm392, %v1232, 0
        %1241 = vmatprep.subr.mxu0 0.0
        %1242 = vmatpush1.xpose.msra.mxu0 %v1237
        %1243 = vmatprep.subr.mxu0 0.0
        %1244 = vmatpush1.xpose.msra.mxu0 %v1239
        %1245 = vmatprep.subr.mxu0 0.0
        %1246 = vmatpush1.xpose.msra.mxu0 0.0
        %1247 = vmatprep.subr.mxu0 0.0
        %1248 = vmatpush1.xpose.msra.mxu0 0.0
        %1249 = vmatprep.subr.mxu0 0.0
        %1250 = vmatpush1.xpose.msra.mxu0 0.0
        %1251 = vmatprep.subr.mxu0 0.0
        %1252 = vmatpush1.xpose.msra.mxu0 0.0
        %1253 = vmatprep.subr.mxu0 0.0
        %1254 = vmatpush1.xpose.msra.mxu0 0.0
        %1255 = vmatprep.subr.mxu0 0.0
        %1256 = vmatpush1.xpose.msra.mxu0 0.0
        %1257 = vmatprep.subr.mxu0 0.0
        %1258 = vmatpush1.xpose.msra.mxu0 0.0
        %1259 = vmatprep.subr.mxu0 0.0
        %1260 = vmatpush1.xpose.msra.mxu0 0.0
        %1261 = vmatprep.subr.mxu0 0.0
        %1262 = vmatpush1.xpose.msra.mxu0 0.0
        %1263 = vmatprep.subr.mxu0 0.0
        %1264 = vmatpush1.xpose.msra.mxu0 0.0
        %1265 = vmatprep.subr.mxu0 0.0
        %1266 = vmatpush1.xpose.msra.mxu0 0.0
        %1267 = vmatprep.subr.mxu0 0.0
        %1268 = vmatpush1.xpose.msra.mxu0 0.0
        %1269 = vmatprep.subr.mxu0 0.0
        %1270 = vmatpush1.xpose.msra.mxu0 0.0
        %1271 = vmatprep.subr.mxu0 0.0
        %1272 = vmatpush1.xpose.msra.mxu0 0.0
        %1273 = vmatprep.subr.mxu0 0.0
        %1274 = vmatpush1.xpose.msra.mxu0 0.0
        %1275 = vmatprep.subr.mxu0 0.0
        %1276 = vmatpush1.xpose.msra.mxu0 0.0
        %1277 = vmatprep.subr.mxu0 0.0
        %1278 = vmatpush1.xpose.msra.mxu0 0.0
        %1279 = vmatprep.subr.mxu0 0.0
        %1280 = vmatpush1.xpose.msra.mxu0 0.0
        %1281 = vmatprep.subr.mxu0 0.0
        %1282 = vmatpush1.xpose.msra.mxu0 0.0
        %1283 = vmatprep.subr.mxu0 0.0
        %1284 = vmatpush1.xpose.msra.mxu0 0.0
        %1285 = vmatprep.subr.mxu0 0.0
        %1286 = vmatpush1.xpose.msra.mxu0 0.0
        %1287 = vmatprep.subr.mxu0 0.0
        %1288 = vmatpush1.xpose.msra.mxu0 0.0
        %1289 = vmatprep.subr.mxu0 0.0
        %1290 = vmatpush1.xpose.msra.mxu0 0.0
        %1291 = vmatprep.subr.mxu0 0.0
        %1292 = vmatpush1.xpose.msra.mxu0 0.0
        %1293 = vmatprep.subr.mxu0 0.0
        %1294 = vmatpush1.xpose.msra.mxu0 0.0
        %1295 = vmatprep.subr.mxu0 0.0
        %1296 = vmatpush1.xpose.msra.mxu0 0.0
        %1297 = vmatprep.subr.mxu0 0.0
        %1298 = vmatpush1.xpose.msra.mxu0 0.0
        %1299 = vmatprep.subr.mxu0 0.0
        %1300 = vmatpush1.xpose.msra.mxu0 0.0
        %1301 = vmatprep.subr.mxu0 0.0
        %1302 = vmatpush1.xpose.msra.mxu0 0.0
        %1303 = vmatprep.subr.mxu0 0.0
        %1304 = vmatpush1.xpose.msra.mxu0 0.0
        %1305 = vmatprep.mubr.f32.mxu0 0.0
        %1306 = vmatmul.mubr.f32.gmra.mrb[0].mxu0 %v1233
        %v1307 = vpop.f32.mrb[0].mxu0
        %v1308 = vadd.f32 0.0, %v1307
        %v1309 = vpop.f32.mrb[0].mxu0
        %1310 = vmatprep.mubr.f32.mxu0 0.0
        %1311 = vmatmul.mubr.f32.gmra.mrb[0].mxu0 %v1235
        %v1312 = vpop.f32.mrb[0].mxu0
        %v1313 = vadd.f32 0.0, %v1312
        %v1314 = vpop.f32.mrb[0].mxu0
        %1315 = vdwg.mxu0
        %v1316 = vmul.f32 %v1308, 0.35355338
        %v1317 = vmul.f32 %v1313, 0.35355338
        %v1318 = vsel %vm478, %v1316, -inf
        %1319 = vmax.xlane.f32.xlu0 %v1318
        %v1320 = vpop.xlane.xlu0 %1319
        %v1321 = vsel %vm478, %v1317, -inf
        %1322 = vmax.xlane.f32.xlu0 %v1321
        %v1323 = vpop.xlane.xlu0 %1322
        %v1324 = vsub.f32 %v1316, %v1320
        %v1325 = vsub.f32 %v1317, %v1323
        %v1326 = vmul.f32 %v1324, 1.442695
        %v1327 = vpow.pop %v1326
        %v1328 = vmul.f32 %v1325, 1.442695
        %v1329 = vpow.pop %v1328
        %v1330 = vsel %vm478, %v1327, 0.0
        %1331 = vadd.xlane.f32.xlu0 %v1330
        %v1332 = vpop.xlane.xlu0 %1331
        %v1333 = vsel %vm478, %v1329, 0.0
        %1334 = vadd.xlane.f32.xlu0 %v1333
        %v1335 = vpop.xlane.xlu0 %1334
        %1336 = vrot.lane.b32.xlu0 %v378, 96
        %v1337 = vpop.permute.xlu0 %1336
        %1338 = vrot.lane.b32.xlu0 %v384, 96
        %v1339 = vpop.permute.xlu0 %1338
        %v1343 = vsel %vm478, %v1327, 0
        %v1346 = vsel %vm478, %v1329, 0
        %1348 = vmatprep.subr.mxu0 0.0
        %1349 = vmatpush1.msra.mxu0 %v1337
        %1350 = vmatprep.subr.mxu0 0.0
        %1351 = vmatpush1.msra.mxu0 %v1339
        %1352 = vmatprep.subr.mxu0 0.0
        %1353 = vmatpush1.msra.mxu0 0.0
        %1354 = vmatprep.subr.mxu0 0.0
        %1355 = vmatpush1.msra.mxu0 0.0
        %1356 = vmatprep.subr.mxu0 0.0
        %1357 = vmatpush1.msra.mxu0 0.0
        %1358 = vmatprep.subr.mxu0 0.0
        %1359 = vmatpush1.msra.mxu0 0.0
        %1360 = vmatprep.subr.mxu0 0.0
        %1361 = vmatpush1.msra.mxu0 0.0
        %1362 = vmatprep.subr.mxu0 0.0
        %1363 = vmatpush1.msra.mxu0 0.0
        %1364 = vmatprep.subr.mxu0 0.0
        %1365 = vmatpush1.msra.mxu0 0.0
        %1366 = vmatprep.subr.mxu0 0.0
        %1367 = vmatpush1.msra.mxu0 0.0
        %1368 = vmatprep.subr.mxu0 0.0
        %1369 = vmatpush1.msra.mxu0 0.0
        %1370 = vmatprep.subr.mxu0 0.0
        %1371 = vmatpush1.msra.mxu0 0.0
        %1372 = vmatprep.subr.mxu0 0.0
        %1373 = vmatpush1.msra.mxu0 0.0
        %1374 = vmatprep.subr.mxu0 0.0
        %1375 = vmatpush1.msra.mxu0 0.0
        %1376 = vmatprep.subr.mxu0 0.0
        %1377 = vmatpush1.msra.mxu0 0.0
        %1378 = vmatprep.subr.mxu0 0.0
        %1379 = vmatpush1.msra.mxu0 0.0
        %1380 = vmatprep.subr.mxu0 0.0
        %1381 = vmatpush1.msra.mxu0 0.0
        %1382 = vmatprep.subr.mxu0 0.0
        %1383 = vmatpush1.msra.mxu0 0.0
        %1384 = vmatprep.subr.mxu0 0.0
        %1385 = vmatpush1.msra.mxu0 0.0
        %1386 = vmatprep.subr.mxu0 0.0
        %1387 = vmatpush1.msra.mxu0 0.0
        %1388 = vmatprep.subr.mxu0 0.0
        %1389 = vmatpush1.msra.mxu0 0.0
        %1390 = vmatprep.subr.mxu0 0.0
        %1391 = vmatpush1.msra.mxu0 0.0
        %1392 = vmatprep.subr.mxu0 0.0
        %1393 = vmatpush1.msra.mxu0 0.0
        %1394 = vmatprep.subr.mxu0 0.0
        %1395 = vmatpush1.msra.mxu0 0.0
        %1396 = vmatprep.subr.mxu0 0.0
        %1397 = vmatpush1.msra.mxu0 0.0
        %1398 = vmatprep.subr.mxu0 0.0
        %1399 = vmatpush1.msra.mxu0 0.0
        %1400 = vmatprep.subr.mxu0 0.0
        %1401 = vmatpush1.msra.mxu0 0.0
        %1402 = vmatprep.subr.mxu0 0.0
        %1403 = vmatpush1.msra.mxu0 0.0
        %1404 = vmatprep.subr.mxu0 0.0
        %1405 = vmatpush1.msra.mxu0 0.0
        %1406 = vmatprep.subr.mxu0 0.0
        %1407 = vmatpush1.msra.mxu0 0.0
        %1408 = vmatprep.subr.mxu0 0.0
        %1409 = vmatpush1.msra.mxu0 0.0
        %1410 = vmatprep.subr.mxu0 0.0
        %1411 = vmatpush1.msra.mxu0 0.0
        %1412 = vmatprep.mubr.f32.mxu0 0.0
        %1413 = vmatmul.mubr.f32.gmra.mrb[0].mxu0 %v1343
        %v1414 = vpop.f32.mrb[0].mxu0
        %v1415 = vadd.f32 0.0, %v1414
        %v1416 = vpop.f32.mrb[0].mxu0
        %1417 = vmatprep.mubr.f32.mxu0 0.0
        %1418 = vmatmul.mubr.f32.gmra.mrb[0].mxu0 %v1346
        %v1419 = vpop.f32.mrb[0].mxu0
        %v1420 = vadd.f32 0.0, %v1419
        %v1421 = vpop.f32.mrb[0].mxu0
        %1422 = vdwg.mxu0
        %v1423 = vrcp.pop %v1332
        %v1424 = vmul.f32 %v1415, %v1423
        %v1425 = vrcp.pop %v1335
        %v1426 = vmul.f32 %v1420, %v1425
        %1429 = vrot.lane.b32.xlu0 %v1424, 32
        %v1430 = vpop.permute.xlu0 %1429
        %1431 = vrot.lane.b32.xlu0 %v1426, 32
        %v1432 = vpop.permute.xlu0 %1431
        %vm1435 = vcmask 326912
        %1436 = vst.msk [vmem:[#allocation2] sm:$0xff] %vm1435, %v1430
        %1437 = vst.msk [vmem:[#allocation2 + $0x8] sm:$0xff] %vm1435, %v1432
        %1438 = vrot.lane.b32.xlu0 %v376, 88
        %v1439 = vpop.permute.xlu0 %1438
        %1440 = vrot.lane.b32.xlu0 %v382, 88
        %v1441 = vpop.permute.xlu0 %1440
        %1442 = vrot.lane.b32.xlu0 %v376, 24
        %v1443 = vpop.permute.xlu0 %1442
        %1444 = vrot.lane.b32.xlu0 %v382, 24
        %v1445 = vpop.permute.xlu0 %1444
        %v1446 = vsel %vm392, %v1439, 0
        %v1448 = vsel %vm392, %v1441, 0
        %v1450 = vsel %vm392, %v1443, 0
        %v1452 = vsel %vm392, %v1445, 0
        %1454 = vmatprep.subr.mxu0 0.0
        %1455 = vmatpush1.xpose.msra.mxu0 %v1450
        %1456 = vmatprep.subr.mxu0 0.0
        %1457 = vmatpush1.xpose.msra.mxu0 %v1452
        %1458 = vmatprep.subr.mxu0 0.0
        %1459 = vmatpush1.xpose.msra.mxu0 0.0
        %1460 = vmatprep.subr.mxu0 0.0
        %1461 = vmatpush1.xpose.msra.mxu0 0.0
        %1462 = vmatprep.subr.mxu0 0.0
        %1463 = vmatpush1.xpose.msra.mxu0 0.0
        %1464 = vmatprep.subr.mxu0 0.0
        %1465 = vmatpush1.xpose.msra.mxu0 0.0
        %1466 = vmatprep.subr.mxu0 0.0
        %1467 = vmatpush1.xpose.msra.mxu0 0.0
        %1468 = vmatprep.subr.mxu0 0.0
        %1469 = vmatpush1.xpose.msra.mxu0 0.0
        %1470 = vmatprep.subr.mxu0 0.0
        %1471 = vmatpush1.xpose.msra.mxu0 0.0
        %1472 = vmatprep.subr.mxu0 0.0
        %1473 = vmatpush1.xpose.msra.mxu0 0.0
        %1474 = vmatprep.subr.mxu0 0.0
        %1475 = vmatpush1.xpose.msra.mxu0 0.0
        %1476 = vmatprep.subr.mxu0 0.0
        %1477 = vmatpush1.xpose.msra.mxu0 0.0
        %1478 = vmatprep.subr.mxu0 0.0
        %1479 = vmatpush1.xpose.msra.mxu0 0.0
        %1480 = vmatprep.subr.mxu0 0.0
        %1481 = vmatpush1.xpose.msra.mxu0 0.0
        %1482 = vmatprep.subr.mxu0 0.0
        %1483 = vmatpush1.xpose.msra.mxu0 0.0
        %1484 = vmatprep.subr.mxu0 0.0
        %1485 = vmatpush1.xpose.msra.mxu0 0.0
        %1486 = vmatprep.subr.mxu0 0.0
        %1487 = vmatpush1.xpose.msra.mxu0 0.0
        %1488 = vmatprep.subr.mxu0 0.0
        %1489 = vmatpush1.xpose.msra.mxu0 0.0
        %1490 = vmatprep.subr.mxu0 0.0
        %1491 = vmatpush1.xpose.msra.mxu0 0.0
        %1492 = vmatprep.subr.mxu0 0.0
        %1493 = vmatpush1.xpose.msra.mxu0 0.0
        %1494 = vmatprep.subr.mxu0 0.0
        %1495 = vmatpush1.xpose.msra.mxu0 0.0
        %1496 = vmatprep.subr.mxu0 0.0
        %1497 = vmatpush1.xpose.msra.mxu0 0.0
        %1498 = vmatprep.subr.mxu0 0.0
        %1499 = vmatpush1.xpose.msra.mxu0 0.0
        %1500 = vmatprep.subr.mxu0 0.0
        %1501 = vmatpush1.xpose.msra.mxu0 0.0
        %1502 = vmatprep.subr.mxu0 0.0
        %1503 = vmatpush1.xpose.msra.mxu0 0.0
        %1504 = vmatprep.subr.mxu0 0.0
        %1505 = vmatpush1.xpose.msra.mxu0 0.0
        %1506 = vmatprep.subr.mxu0 0.0
        %1507 = vmatpush1.xpose.msra.mxu0 0.0
        %1508 = vmatprep.subr.mxu0 0.0
        %1509 = vmatpush1.xpose.msra.mxu0 0.0
        %1510 = vmatprep.subr.mxu0 0.0
        %1511 = vmatpush1.xpose.msra.mxu0 0.0
        %1512 = vmatprep.subr.mxu0 0.0
        %1513 = vmatpush1.xpose.msra.mxu0 0.0
        %1514 = vmatprep.subr.mxu0 0.0
        %1515 = vmatpush1.xpose.msra.mxu0 0.0
        %1516 = vmatprep.subr.mxu0 0.0
        %1517 = vmatpush1.xpose.msra.mxu0 0.0
        %1518 = vmatprep.mubr.f32.mxu0 0.0
        %1519 = vmatmul.mubr.f32.gmra.mrb[0].mxu0 %v1446
        %v1520 = vpop.f32.mrb[0].mxu0
        %v1521 = vadd.f32 0.0, %v1520
        %v1522 = vpop.f32.mrb[0].mxu0
        %1523 = vmatprep.mubr.f32.mxu0 0.0
        %1524 = vmatmul.mubr.f32.gmra.mrb[0].mxu0 %v1448
        %v1525 = vpop.f32.mrb[0].mxu0
        %v1526 = vadd.f32 0.0, %v1525
        %v1527 = vpop.f32.mrb[0].mxu0
        %1528 = vdwg.mxu0
        %v1529 = vmul.f32 %v1521, 0.35355338
        %v1530 = vmul.f32 %v1526, 0.35355338
        %v1531 = vsel %vm478, %v1529, -inf
        %1532 = vmax.xlane.f32.xlu0 %v1531
        %v1533 = vpop.xlane.xlu0 %1532
        %v1534 = vsel %vm478, %v1530, -inf
        %1535 = vmax.xlane.f32.xlu0 %v1534
        %v1536 = vpop.xlane.xlu0 %1535
        %v1537 = vsub.f32 %v1529, %v1533
        %v1538 = vsub.f32 %v1530, %v1536
        %v1539 = vmul.f32 %v1537, 1.442695
        %v1540 = vpow.pop %v1539
        %v1541 = vmul.f32 %v1538, 1.442695
        %v1542 = vpow.pop %v1541
        %v1543 = vsel %vm478, %v1540, 0.0
        %1544 = vadd.xlane.f32.xlu0 %v1543
        %v1545 = vpop.xlane.xlu0 %1544
        %v1546 = vsel %vm478, %v1542, 0.0
        %1547 = vadd.xlane.f32.xlu0 %v1546
        %v1548 = vpop.xlane.xlu0 %1547
        %1549 = vrot.lane.b32.xlu0 %v378, 88
        %v1550 = vpop.permute.xlu0 %1549
        %1551 = vrot.lane.b32.xlu0 %v384, 88
        %v1552 = vpop.permute.xlu0 %1551
        %v1556 = vsel %vm478, %v1540, 0
        %v1559 = vsel %vm478, %v1542, 0
        %1561 = vmatprep.subr.mxu0 0.0
        %1562 = vmatpush1.msra.mxu0 %v1550
        %1563 = vmatprep.subr.mxu0 0.0
        %1564 = vmatpush1.msra.mxu0 %v1552
        %1565 = vmatprep.subr.mxu0 0.0
        %1566 = vmatpush1.msra.mxu0 0.0
        %1567 = vmatprep.subr.mxu0 0.0
        %1568 = vmatpush1.msra.mxu0 0.0
        %1569 = vmatprep.subr.mxu0 0.0
        %1570 = vmatpush1.msra.mxu0 0.0
        %1571 = vmatprep.subr.mxu0 0.0
        %1572 = vmatpush1.msra.mxu0 0.0
        %1573 = vmatprep.subr.mxu0 0.0
        %1574 = vmatpush1.msra.mxu0 0.0
        %1575 = vmatprep.subr.mxu0 0.0
        %1576 = vmatpush1.msra.mxu0 0.0
        %1577 = vmatprep.subr.mxu0 0.0
        %1578 = vmatpush1.msra.mxu0 0.0
        %1579 = vmatprep.subr.mxu0 0.0
        %1580 = vmatpush1.msra.mxu0 0.0
        %1581 = vmatprep.subr.mxu0 0.0
        %1582 = vmatpush1.msra.mxu0 0.0
        %1583 = vmatprep.subr.mxu0 0.0
        %1584 = vmatpush1.msra.mxu0 0.0
        %1585 = vmatprep.subr.mxu0 0.0
        %1586 = vmatpush1.msra.mxu0 0.0
        %1587 = vmatprep.subr.mxu0 0.0
        %1588 = vmatpush1.msra.mxu0 0.0
        %1589 = vmatprep.subr.mxu0 0.0
        %1590 = vmatpush1.msra.mxu0 0.0
        %1591 = vmatprep.subr.mxu0 0.0
        %1592 = vmatpush1.msra.mxu0 0.0
        %1593 = vmatprep.subr.mxu0 0.0
        %1594 = vmatpush1.msra.mxu0 0.0
        %1595 = vmatprep.subr.mxu0 0.0
        %1596 = vmatpush1.msra.mxu0 0.0
        %1597 = vmatprep.subr.mxu0 0.0
        %1598 = vmatpush1.msra.mxu0 0.0
        %1599 = vmatprep.subr.mxu0 0.0
        %1600 = vmatpush1.msra.mxu0 0.0
        %1601 = vmatprep.subr.mxu0 0.0
        %1602 = vmatpush1.msra.mxu0 0.0
        %1603 = vmatprep.subr.mxu0 0.0
        %1604 = vmatpush1.msra.mxu0 0.0
        %1605 = vmatprep.subr.mxu0 0.0
        %1606 = vmatpush1.msra.mxu0 0.0
        %1607 = vmatprep.subr.mxu0 0.0
        %1608 = vmatpush1.msra.mxu0 0.0
        %1609 = vmatprep.subr.mxu0 0.0
        %1610 = vmatpush1.msra.mxu0 0.0
        %1611 = vmatprep.subr.mxu0 0.0
        %1612 = vmatpush1.msra.mxu0 0.0
        %1613 = vmatprep.subr.mxu0 0.0
        %1614 = vmatpush1.msra.mxu0 0.0
        %1615 = vmatprep.subr.mxu0 0.0
        %1616 = vmatpush1.msra.mxu0 0.0
        %1617 = vmatprep.subr.mxu0 0.0
        %1618 = vmatpush1.msra.mxu0 0.0
        %1619 = vmatprep.subr.mxu0 0.0
        %1620 = vmatpush1.msra.mxu0 0.0
        %1621 = vmatprep.subr.mxu0 0.0
        %1622 = vmatpush1.msra.mxu0 0.0
        %1623 = vmatprep.subr.mxu0 0.0
        %1624 = vmatpush1.msra.mxu0 0.0
        %1625 = vmatprep.mubr.f32.mxu0 0.0
        %1626 = vmatmul.mubr.f32.gmra.mrb[0].mxu0 %v1556
        %v1627 = vpop.f32.mrb[0].mxu0
        %v1628 = vadd.f32 0.0, %v1627
        %v1629 = vpop.f32.mrb[0].mxu0
        %1630 = vmatprep.mubr.f32.mxu0 0.0
        %1631 = vmatmul.mubr.f32.gmra.mrb[0].mxu0 %v1559
        %v1632 = vpop.f32.mrb[0].mxu0
        %v1633 = vadd.f32 0.0, %v1632
        %v1634 = vpop.f32.mrb[0].mxu0
        %1635 = vdwg.mxu0
        %v1636 = vrcp.pop %v1545
        %v1637 = vmul.f32 %v1628, %v1636
        %v1638 = vrcp.pop %v1548
        %v1639 = vmul.f32 %v1633, %v1638
        %1642 = vrot.lane.b32.xlu0 %v1637, 40
        %v1643 = vpop.permute.xlu0 %1642
        %1644 = vrot.lane.b32.xlu0 %v1639, 40
        %v1645 = vpop.permute.xlu0 %1644
        %vm1648 = vcmask 392512
        %1649 = vst.msk [vmem:[#allocation2] sm:$0xff] %vm1648, %v1643
        %1650 = vst.msk [vmem:[#allocation2 + $0x8] sm:$0xff] %vm1648, %v1645
        %1651 = vrot.lane.b32.xlu0 %v376, 80
        %v1652 = vpop.permute.xlu0 %1651
        %1653 = vrot.lane.b32.xlu0 %v382, 80
        %v1654 = vpop.permute.xlu0 %1653
        %1655 = vrot.lane.b32.xlu0 %v376, 16
        %v1656 = vpop.permute.xlu0 %1655
        %1657 = vrot.lane.b32.xlu0 %v382, 16
        %v1658 = vpop.permute.xlu0 %1657
        %v1659 = vsel %vm392, %v1652, 0
        %v1661 = vsel %vm392, %v1654, 0
        %v1663 = vsel %vm392, %v1656, 0
        %v1665 = vsel %vm392, %v1658, 0
        %1667 = vmatprep.subr.mxu0 0.0
        %1668 = vmatpush1.xpose.msra.mxu0 %v1663
        %1669 = vmatprep.subr.mxu0 0.0
        %1670 = vmatpush1.xpose.msra.mxu0 %v1665
        %1671 = vmatprep.subr.mxu0 0.0
        %1672 = vmatpush1.xpose.msra.mxu0 0.0
        %1673 = vmatprep.subr.mxu0 0.0
        %1674 = vmatpush1.xpose.msra.mxu0 0.0
        %1675 = vmatprep.subr.mxu0 0.0
        %1676 = vmatpush1.xpose.msra.mxu0 0.0
        %1677 = vmatprep.subr.mxu0 0.0
        %1678 = vmatpush1.xpose.msra.mxu0 0.0
        %1679 = vmatprep.subr.mxu0 0.0
        %1680 = vmatpush1.xpose.msra.mxu0 0.0
        %1681 = vmatprep.subr.mxu0 0.0
        %1682 = vmatpush1.xpose.msra.mxu0 0.0
        %1683 = vmatprep.subr.mxu0 0.0
        %1684 = vmatpush1.xpose.msra.mxu0 0.0
        %1685 = vmatprep.subr.mxu0 0.0
        %1686 = vmatpush1.xpose.msra.mxu0 0.0
        %1687 = vmatprep.subr.mxu0 0.0
        %1688 = vmatpush1.xpose.msra.mxu0 0.0
        %1689 = vmatprep.subr.mxu0 0.0
        %1690 = vmatpush1.xpose.msra.mxu0 0.0
        %1691 = vmatprep.subr.mxu0 0.0
        %1692 = vmatpush1.xpose.msra.mxu0 0.0
        %1693 = vmatprep.subr.mxu0 0.0
        %1694 = vmatpush1.xpose.msra.mxu0 0.0
        %1695 = vmatprep.subr.mxu0 0.0
        %1696 = vmatpush1.xpose.msra.mxu0 0.0
        %1697 = vmatprep.subr.mxu0 0.0
        %1698 = vmatpush1.xpose.msra.mxu0 0.0
        %1699 = vmatprep.subr.mxu0 0.0
        %1700 = vmatpush1.xpose.msra.mxu0 0.0
        %1701 = vmatprep.subr.mxu0 0.0
        %1702 = vmatpush1.xpose.msra.mxu0 0.0
        %1703 = vmatprep.subr.mxu0 0.0
        %1704 = vmatpush1.xpose.msra.mxu0 0.0
        %1705 = vmatprep.subr.mxu0 0.0
        %1706 = vmatpush1.xpose.msra.mxu0 0.0
        %1707 = vmatprep.subr.mxu0 0.0
        %1708 = vmatpush1.xpose.msra.mxu0 0.0
        %1709 = vmatprep.subr.mxu0 0.0
        %1710 = vmatpush1.xpose.msra.mxu0 0.0
        %1711 = vmatprep.subr.mxu0 0.0
        %1712 = vmatpush1.xpose.msra.mxu0 0.0
        %1713 = vmatprep.subr.mxu0 0.0
        %1714 = vmatpush1.xpose.msra.mxu0 0.0
        %1715 = vmatprep.subr.mxu0 0.0
        %1716 = vmatpush1.xpose.msra.mxu0 0.0
        %1717 = vmatprep.subr.mxu0 0.0
        %1718 = vmatpush1.xpose.msra.mxu0 0.0
        %1719 = vmatprep.subr.mxu0 0.0
        %1720 = vmatpush1.xpose.msra.mxu0 0.0
        %1721 = vmatprep.subr.mxu0 0.0
        %1722 = vmatpush1.xpose.msra.mxu0 0.0
        %1723 = vmatprep.subr.mxu0 0.0
        %1724 = vmatpush1.xpose.msra.mxu0 0.0
        %1725 = vmatprep.subr.mxu0 0.0
        %1726 = vmatpush1.xpose.msra.mxu0 0.0
        %1727 = vmatprep.subr.mxu0 0.0
        %1728 = vmatpush1.xpose.msra.mxu0 0.0
        %1729 = vmatprep.subr.mxu0 0.0
        %1730 = vmatpush1.xpose.msra.mxu0 0.0
        %1731 = vmatprep.mubr.f32.mxu0 0.0
        %1732 = vmatmul.mubr.f32.gmra.mrb[0].mxu0 %v1659
        %v1733 = vpop.f32.mrb[0].mxu0
        %v1734 = vadd.f32 0.0, %v1733
        %v1735 = vpop.f32.mrb[0].mxu0
        %1736 = vmatprep.mubr.f32.mxu0 0.0
        %1737 = vmatmul.mubr.f32.gmra.mrb[0].mxu0 %v1661
        %v1738 = vpop.f32.mrb[0].mxu0
        %v1739 = vadd.f32 0.0, %v1738
        %v1740 = vpop.f32.mrb[0].mxu0
        %1741 = vdwg.mxu0
        %v1742 = vmul.f32 %v1734, 0.35355338
        %v1743 = vmul.f32 %v1739, 0.35355338
        %v1744 = vsel %vm478, %v1742, -inf
        %1745 = vmax.xlane.f32.xlu0 %v1744
        %v1746 = vpop.xlane.xlu0 %1745
        %v1747 = vsel %vm478, %v1743, -inf
        %1748 = vmax.xlane.f32.xlu0 %v1747
        %v1749 = vpop.xlane.xlu0 %1748
        %v1750 = vsub.f32 %v1742, %v1746
        %v1751 = vsub.f32 %v1743, %v1749
        %v1752 = vmul.f32 %v1750, 1.442695
        %v1753 = vpow.pop %v1752
        %v1754 = vmul.f32 %v1751, 1.442695
        %v1755 = vpow.pop %v1754
        %v1756 = vsel %vm478, %v1753, 0.0
        %1757 = vadd.xlane.f32.xlu0 %v1756
        %v1758 = vpop.xlane.xlu0 %1757
        %v1759 = vsel %vm478, %v1755, 0.0
        %1760 = vadd.xlane.f32.xlu0 %v1759
        %v1761 = vpop.xlane.xlu0 %1760
        %1762 = vrot.lane.b32.xlu0 %v378, 80
        %v1763 = vpop.permute.xlu0 %1762
        %1764 = vrot.lane.b32.xlu0 %v384, 80
        %v1765 = vpop.permute.xlu0 %1764
        %v1769 = vsel %vm478, %v1753, 0
        %v1772 = vsel %vm478, %v1755, 0
        %1774 = vmatprep.subr.mxu0 0.0
        %1775 = vmatpush1.msra.mxu0 %v1763
        %1776 = vmatprep.subr.mxu0 0.0
        %1777 = vmatpush1.msra.mxu0 %v1765
        %1778 = vmatprep.subr.mxu0 0.0
        %1779 = vmatpush1.msra.mxu0 0.0
        %1780 = vmatprep.subr.mxu0 0.0
        %1781 = vmatpush1.msra.mxu0 0.0
        %1782 = vmatprep.subr.mxu0 0.0
        %1783 = vmatpush1.msra.mxu0 0.0
        %1784 = vmatprep.subr.mxu0 0.0
        %1785 = vmatpush1.msra.mxu0 0.0
        %1786 = vmatprep.subr.mxu0 0.0
        %1787 = vmatpush1.msra.mxu0 0.0
        %1788 = vmatprep.subr.mxu0 0.0
        %1789 = vmatpush1.msra.mxu0 0.0
        %1790 = vmatprep.subr.mxu0 0.0
        %1791 = vmatpush1.msra.mxu0 0.0
        %1792 = vmatprep.subr.mxu0 0.0
        %1793 = vmatpush1.msra.mxu0 0.0
        %1794 = vmatprep.subr.mxu0 0.0
        %1795 = vmatpush1.msra.mxu0 0.0
        %1796 = vmatprep.subr.mxu0 0.0
        %1797 = vmatpush1.msra.mxu0 0.0
        %1798 = vmatprep.subr.mxu0 0.0
        %1799 = vmatpush1.msra.mxu0 0.0
        %1800 = vmatprep.subr.mxu0 0.0
        %1801 = vmatpush1.msra.mxu0 0.0
        %1802 = vmatprep.subr.mxu0 0.0
        %1803 = vmatpush1.msra.mxu0 0.0
        %1804 = vmatprep.subr.mxu0 0.0
        %1805 = vmatpush1.msra.mxu0 0.0
        %1806 = vmatprep.subr.mxu0 0.0
        %1807 = vmatpush1.msra.mxu0 0.0
        %1808 = vmatprep.subr.mxu0 0.0
        %1809 = vmatpush1.msra.mxu0 0.0
        %1810 = vmatprep.subr.mxu0 0.0
        %1811 = vmatpush1.msra.mxu0 0.0
        %1812 = vmatprep.subr.mxu0 0.0
        %1813 = vmatpush1.msra.mxu0 0.0
        %1814 = vmatprep.subr.mxu0 0.0
        %1815 = vmatpush1.msra.mxu0 0.0
        %1816 = vmatprep.subr.mxu0 0.0
        %1817 = vmatpush1.msra.mxu0 0.0
        %1818 = vmatprep.subr.mxu0 0.0
        %1819 = vmatpush1.msra.mxu0 0.0
        %1820 = vmatprep.subr.mxu0 0.0
        %1821 = vmatpush1.msra.mxu0 0.0
        %1822 = vmatprep.subr.mxu0 0.0
        %1823 = vmatpush1.msra.mxu0 0.0
        %1824 = vmatprep.subr.mxu0 0.0
        %1825 = vmatpush1.msra.mxu0 0.0
        %1826 = vmatprep.subr.mxu0 0.0
        %1827 = vmatpush1.msra.mxu0 0.0
        %1828 = vmatprep.subr.mxu0 0.0
        %1829 = vmatpush1.msra.mxu0 0.0
        %1830 = vmatprep.subr.mxu0 0.0
        %1831 = vmatpush1.msra.mxu0 0.0
        %1832 = vmatprep.subr.mxu0 0.0
        %1833 = vmatpush1.msra.mxu0 0.0
        %1834 = vmatprep.subr.mxu0 0.0
        %1835 = vmatpush1.msra.mxu0 0.0
        %1836 = vmatprep.subr.mxu0 0.0
        %1837 = vmatpush1.msra.mxu0 0.0
        %1838 = vmatprep.mubr.f32.mxu0 0.0
        %1839 = vmatmul.mubr.f32.gmra.mrb[0].mxu0 %v1769
        %v1840 = vpop.f32.mrb[0].mxu0
        %v1841 = vadd.f32 0.0, %v1840
        %v1842 = vpop.f32.mrb[0].mxu0
        %1843 = vmatprep.mubr.f32.mxu0 0.0
        %1844 = vmatmul.mubr.f32.gmra.mrb[0].mxu0 %v1772
        %v1845 = vpop.f32.mrb[0].mxu0
        %v1846 = vadd.f32 0.0, %v1845
        %v1847 = vpop.f32.mrb[0].mxu0
        %1848 = vdwg.mxu0
        %v1849 = vrcp.pop %v1758
        %v1850 = vmul.f32 %v1841, %v1849
        %v1851 = vrcp.pop %v1761
        %v1852 = vmul.f32 %v1846, %v1851
        %1855 = vrot.lane.b32.xlu0 %v1850, 48
        %v1856 = vpop.permute.xlu0 %1855
        %1857 = vrot.lane.b32.xlu0 %v1852, 48
        %v1858 = vpop.permute.xlu0 %1857
        %vm1861 = vcmask 458112
        %1862 = vst.msk [vmem:[#allocation2] sm:$0xff] %vm1861, %v1856
        %1863 = vst.msk [vmem:[#allocation2 + $0x8] sm:$0xff] %vm1861, %v1858
        %1864 = vrot.lane.b32.xlu0 %v376, 72
        %v1865 = vpop.permute.xlu0 %1864
        %1866 = vrot.lane.b32.xlu0 %v382, 72
        %v1867 = vpop.permute.xlu0 %1866
        %1868 = vrot.lane.b32.xlu0 %v376, 8
        %v1869 = vpop.permute.xlu0 %1868
        %1870 = vrot.lane.b32.xlu0 %v382, 8
        %v1871 = vpop.permute.xlu0 %1870
        %v1872 = vsel %vm392, %v1865, 0
        %v1874 = vsel %vm392, %v1867, 0
        %v1876 = vsel %vm392, %v1869, 0
        %v1878 = vsel %vm392, %v1871, 0
        %1880 = vmatprep.subr.mxu0 0.0
        %1881 = vmatpush1.xpose.msra.mxu0 %v1876
        %1882 = vmatprep.subr.mxu0 0.0
        %1883 = vmatpush1.xpose.msra.mxu0 %v1878
        %1884 = vmatprep.subr.mxu0 0.0
        %1885 = vmatpush1.xpose.msra.mxu0 0.0
        %1886 = vmatprep.subr.mxu0 0.0
        %1887 = vmatpush1.xpose.msra.mxu0 0.0
        %1888 = vmatprep.subr.mxu0 0.0
        %1889 = vmatpush1.xpose.msra.mxu0 0.0
        %1890 = vmatprep.subr.mxu0 0.0
        %1891 = vmatpush1.xpose.msra.mxu0 0.0
        %1892 = vmatprep.subr.mxu0 0.0
        %1893 = vmatpush1.xpose.msra.mxu0 0.0
        %1894 = vmatprep.subr.mxu0 0.0
        %1895 = vmatpush1.xpose.msra.mxu0 0.0
        %1896 = vmatprep.subr.mxu0 0.0
        %1897 = vmatpush1.xpose.msra.mxu0 0.0
        %1898 = vmatprep.subr.mxu0 0.0
        %1899 = vmatpush1.xpose.msra.mxu0 0.0
        %1900 = vmatprep.subr.mxu0 0.0
        %1901 = vmatpush1.xpose.msra.mxu0 0.0
        %1902 = vmatprep.subr.mxu0 0.0
        %1903 = vmatpush1.xpose.msra.mxu0 0.0
        %1904 = vmatprep.subr.mxu0 0.0
        %1905 = vmatpush1.xpose.msra.mxu0 0.0
        %1906 = vmatprep.subr.mxu0 0.0
        %1907 = vmatpush1.xpose.msra.mxu0 0.0
        %1908 = vmatprep.subr.mxu0 0.0
        %1909 = vmatpush1.xpose.msra.mxu0 0.0
        %1910 = vmatprep.subr.mxu0 0.0
        %1911 = vmatpush1.xpose.msra.mxu0 0.0
        %1912 = vmatprep.subr.mxu0 0.0
        %1913 = vmatpush1.xpose.msra.mxu0 0.0
        %1914 = vmatprep.subr.mxu0 0.0
        %1915 = vmatpush1.xpose.msra.mxu0 0.0
        %1916 = vmatprep.subr.mxu0 0.0
        %1917 = vmatpush1.xpose.msra.mxu0 0.0
        %1918 = vmatprep.subr.mxu0 0.0
        %1919 = vmatpush1.xpose.msra.mxu0 0.0
        %1920 = vmatprep.subr.mxu0 0.0
        %1921 = vmatpush1.xpose.msra.mxu0 0.0
        %1922 = vmatprep.subr.mxu0 0.0
        %1923 = vmatpush1.xpose.msra.mxu0 0.0
        %1924 = vmatprep.subr.mxu0 0.0
        %1925 = vmatpush1.xpose.msra.mxu0 0.0
        %1926 = vmatprep.subr.mxu0 0.0
        %1927 = vmatpush1.xpose.msra.mxu0 0.0
        %1928 = vmatprep.subr.mxu0 0.0
        %1929 = vmatpush1.xpose.msra.mxu0 0.0
        %1930 = vmatprep.subr.mxu0 0.0
        %1931 = vmatpush1.xpose.msra.mxu0 0.0
        %1932 = vmatprep.subr.mxu0 0.0
        %1933 = vmatpush1.xpose.msra.mxu0 0.0
        %1934 = vmatprep.subr.mxu0 0.0
        %1935 = vmatpush1.xpose.msra.mxu0 0.0
        %1936 = vmatprep.subr.mxu0 0.0
        %1937 = vmatpush1.xpose.msra.mxu0 0.0
        %1938 = vmatprep.subr.mxu0 0.0
        %1939 = vmatpush1.xpose.msra.mxu0 0.0
        %1940 = vmatprep.subr.mxu0 0.0
        %1941 = vmatpush1.xpose.msra.mxu0 0.0
        %1942 = vmatprep.subr.mxu0 0.0
        %1943 = vmatpush1.xpose.msra.mxu0 0.0
        %1944 = vmatprep.mubr.f32.mxu0 0.0
        %1945 = vmatmul.mubr.f32.gmra.mrb[0].mxu0 %v1872
        %v1946 = vpop.f32.mrb[0].mxu0
        %v1947 = vadd.f32 0.0, %v1946
        %v1948 = vpop.f32.mrb[0].mxu0
        %1949 = vmatprep.mubr.f32.mxu0 0.0
        %1950 = vmatmul.mubr.f32.gmra.mrb[0].mxu0 %v1874
        %v1951 = vpop.f32.mrb[0].mxu0
        %v1952 = vadd.f32 0.0, %v1951
        %v1953 = vpop.f32.mrb[0].mxu0
        %1954 = vdwg.mxu0
        %v1955 = vmul.f32 %v1947, 0.35355338
        %v1956 = vmul.f32 %v1952, 0.35355338
        %v1957 = vsel %vm478, %v1955, -inf
        %1958 = vmax.xlane.f32.xlu0 %v1957
        %v1959 = vpop.xlane.xlu0 %1958
        %v1960 = vsel %vm478, %v1956, -inf
        %1961 = vmax.xlane.f32.xlu0 %v1960
        %v1962 = vpop.xlane.xlu0 %1961
        %v1963 = vsub.f32 %v1955, %v1959
        %v1964 = vsub.f32 %v1956, %v1962
        %v1965 = vmul.f32 %v1963, 1.442695
        %v1966 = vpow.pop %v1965
        %v1967 = vmul.f32 %v1964, 1.442695
        %v1968 = vpow.pop %v1967
        %v1969 = vsel %vm478, %v1966, 0.0
        %1970 = vadd.xlane.f32.xlu0 %v1969
        %v1971 = vpop.xlane.xlu0 %1970
        %v1972 = vsel %vm478, %v1968, 0.0
        %1973 = vadd.xlane.f32.xlu0 %v1972
        %v1974 = vpop.xlane.xlu0 %1973
        %1975 = vrot.lane.b32.xlu0 %v378, 72
        %v1976 = vpop.permute.xlu0 %1975
        %1977 = vrot.lane.b32.xlu0 %v384, 72
        %v1978 = vpop.permute.xlu0 %1977
        %v1982 = vsel %vm478, %v1966, 0
        %v1985 = vsel %vm478, %v1968, 0
        %1987 = vmatprep.subr.mxu0 0.0
        %1988 = vmatpush1.msra.mxu0 %v1976
        %1989 = vmatprep.subr.mxu0 0.0
        %1990 = vmatpush1.msra.mxu0 %v1978
        %1991 = vmatprep.subr.mxu0 0.0
        %1992 = vmatpush1.msra.mxu0 0.0
        %1993 = vmatprep.subr.mxu0 0.0
        %1994 = vmatpush1.msra.mxu0 0.0
        %1995 = vmatprep.subr.mxu0 0.0
        %1996 = vmatpush1.msra.mxu0 0.0
        %1997 = vmatprep.subr.mxu0 0.0
        %1998 = vmatpush1.msra.mxu0 0.0
        %1999 = vmatprep.subr.mxu0 0.0
        %2000 = vmatpush1.msra.mxu0 0.0
        %2001 = vmatprep.subr.mxu0 0.0
        %2002 = vmatpush1.msra.mxu0 0.0
        %2003 = vmatprep.subr.mxu0 0.0
        %2004 = vmatpush1.msra.mxu0 0.0
        %2005 = vmatprep.subr.mxu0 0.0
        %2006 = vmatpush1.msra.mxu0 0.0
        %2007 = vmatprep.subr.mxu0 0.0
        %2008 = vmatpush1.msra.mxu0 0.0
        %2009 = vmatprep.subr.mxu0 0.0
        %2010 = vmatpush1.msra.mxu0 0.0
        %2011 = vmatprep.subr.mxu0 0.0
        %2012 = vmatpush1.msra.mxu0 0.0
        %2013 = vmatprep.subr.mxu0 0.0
        %2014 = vmatpush1.msra.mxu0 0.0
        %2015 = vmatprep.subr.mxu0 0.0
        %2016 = vmatpush1.msra.mxu0 0.0
        %2017 = vmatprep.subr.mxu0 0.0
        %2018 = vmatpush1.msra.mxu0 0.0
        %2019 = vmatprep.subr.mxu0 0.0
        %2020 = vmatpush1.msra.mxu0 0.0
        %2021 = vmatprep.subr.mxu0 0.0
        %2022 = vmatpush1.msra.mxu0 0.0
        %2023 = vmatprep.subr.mxu0 0.0
        %2024 = vmatpush1.msra.mxu0 0.0
        %2025 = vmatprep.subr.mxu0 0.0
        %2026 = vmatpush1.msra.mxu0 0.0
        %2027 = vmatprep.subr.mxu0 0.0
        %2028 = vmatpush1.msra.mxu0 0.0
        %2029 = vmatprep.subr.mxu0 0.0
        %2030 = vmatpush1.msra.mxu0 0.0
        %2031 = vmatprep.subr.mxu0 0.0
        %2032 = vmatpush1.msra.mxu0 0.0
        %2033 = vmatprep.subr.mxu0 0.0
        %2034 = vmatpush1.msra.mxu0 0.0
        %2035 = vmatprep.subr.mxu0 0.0
        %2036 = vmatpush1.msra.mxu0 0.0
        %2037 = vmatprep.subr.mxu0 0.0
        %2038 = vmatpush1.msra.mxu0 0.0
        %2039 = vmatprep.subr.mxu0 0.0
        %2040 = vmatpush1.msra.mxu0 0.0
        %2041 = vmatprep.subr.mxu0 0.0
        %2042 = vmatpush1.msra.mxu0 0.0
        %2043 = vmatprep.subr.mxu0 0.0
        %2044 = vmatpush1.msra.mxu0 0.0
        %2045 = vmatprep.subr.mxu0 0.0
        %2046 = vmatpush1.msra.mxu0 0.0
        %2047 = vmatprep.subr.mxu0 0.0
        %2048 = vmatpush1.msra.mxu0 0.0
        %2049 = vmatprep.subr.mxu0 0.0
        %2050 = vmatpush1.msra.mxu0 0.0
        %2051 = vmatprep.mubr.f32.mxu0 0.0
        %2052 = vmatmul.mubr.f32.gmra.mrb[0].mxu0 %v1982
        %v2053 = vpop.f32.mrb[0].mxu0
        %v2054 = vadd.f32 0.0, %v2053
        %v2055 = vpop.f32.mrb[0].mxu0
        %2056 = vmatprep.mubr.f32.mxu0 0.0
        %2057 = vmatmul.mubr.f32.gmra.mrb[0].mxu0 %v1985
        %v2058 = vpop.f32.mrb[0].mxu0
        %v2059 = vadd.f32 0.0, %v2058
        %v2060 = vpop.f32.mrb[0].mxu0
        %2061 = vdwg.mxu0
        %v2062 = vrcp.pop %v1971
        %v2063 = vmul.f32 %v2054, %v2062
        %v2064 = vrcp.pop %v1974
        %v2065 = vmul.f32 %v2059, %v2064
        %2068 = vrot.lane.b32.xlu0 %v2063, 56
        %v2069 = vpop.permute.xlu0 %2068
        %2070 = vrot.lane.b32.xlu0 %v2065, 56
        %v2071 = vpop.permute.xlu0 %2070
        %vm2074 = vcmask 523712
        %2075 = vst.msk [vmem:[#allocation2] sm:$0xff] %vm2074, %v2069
        %2076 = vst.msk [vmem:[#allocation2 + $0x8] sm:$0xff] %vm2074, %v2071
        %v2077 = vld [vmem:[#allocation2] sm:$0xff]
        %v2078 = vld [vmem:[#allocation2 + $0x8] sm:$0xff]
        %v2079 = vld [vmem:[#allocation8] sm:$0xff]
        %v2080 = vld [vmem:[#allocation8 + $0x8] sm:$0xff]
        %v2081 = vld [vmem:[#allocation8 + $0x10] sm:$0xff]
        %v2082 = vld [vmem:[#allocation8 + $0x18] sm:$0xff]
        %v2083 = vld [vmem:[#allocation8 + $0x20] sm:$0xff]
        %v2084 = vld [vmem:[#allocation8 + $0x28] sm:$0xff]
        %v2085 = vld [vmem:[#allocation8 + $0x30] sm:$0xff]
        %v2086 = vld [vmem:[#allocation8 + $0x38] sm:$0xff]
        %v2087 = vld [vmem:[%s4] sm:$0x1]
        %v2089 = vlaneseq
        %v2090 = vshrl.u32 %v2089, 7
        %v2091 = vsub.s32 0, %v2090
        %v2092 = vrot.slane %v2087, %v2091
        %v2095 = vsel %vm302, %v2077, 0
        %v2098 = vsel %vm302, %v2078, 0
        %2100 = vmatprep.subr.mxu0 0.0
        %2101 = vmatpush1.msra.mxu0 %v2079
        %2102 = vmatprep.subr.mxu0 0.0
        %2103 = vmatpush1.msra.mxu0 %v2080
        %2104 = vmatprep.subr.mxu0 0.0
        %2105 = vmatpush1.msra.mxu0 %v2081
        %2106 = vmatprep.subr.mxu0 0.0
        %2107 = vmatpush1.msra.mxu0 %v2082
        %2108 = vmatprep.subr.mxu0 0.0
        %2109 = vmatpush1.msra.mxu0 %v2083
        %2110 = vmatprep.subr.mxu0 0.0
        %2111 = vmatpush1.msra.mxu0 %v2084
        %2112 = vmatprep.subr.mxu0 0.0
        %2113 = vmatpush1.msra.mxu0 %v2085
        %2114 = vmatprep.subr.mxu0 0.0
        %2115 = vmatpush1.msra.mxu0 %v2086
        %2116 = vmatprep.subr.mxu0 0.0
        %2117 = vmatpush1.msra.mxu0 0.0
        %2118 = vmatprep.subr.mxu0 0.0
        %2119 = vmatpush1.msra.mxu0 0.0
        %2120 = vmatprep.subr.mxu0 0.0
        %2121 = vmatpush1.msra.mxu0 0.0
        %2122 = vmatprep.subr.mxu0 0.0
        %2123 = vmatpush1.msra.mxu0 0.0
        %2124 = vmatprep.subr.mxu0 0.0
        %2125 = vmatpush1.msra.mxu0 0.0
        %2126 = vmatprep.subr.mxu0 0.0
        %2127 = vmatpush1.msra.mxu0 0.0
        %2128 = vmatprep.subr.mxu0 0.0
        %2129 = vmatpush1.msra.mxu0 0.0
        %2130 = vmatprep.subr.mxu0 0.0
        %2131 = vmatpush1.msra.mxu0 0.0
        %2132 = vmatprep.subr.mxu0 0.0
        %2133 = vmatpush1.msra.mxu0 0.0
        %2134 = vmatprep.subr.mxu0 0.0
        %2135 = vmatpush1.msra.mxu0 0.0
        %2136 = vmatprep.subr.mxu0 0.0
        %2137 = vmatpush1.msra.mxu0 0.0
        %2138 = vmatprep.subr.mxu0 0.0
        %2139 = vmatpush1.msra.mxu0 0.0
        %2140 = vmatprep.subr.mxu0 0.0
        %2141 = vmatpush1.msra.mxu0 0.0
        %2142 = vmatprep.subr.mxu0 0.0
        %2143 = vmatpush1.msra.mxu0 0.0
        %2144 = vmatprep.subr.mxu0 0.0
        %2145 = vmatpush1.msra.mxu0 0.0
        %2146 = vmatprep.subr.mxu0 0.0
        %2147 = vmatpush1.msra.mxu0 0.0
        %2148 = vmatprep.subr.mxu0 0.0
        %2149 = vmatpush1.msra.mxu0 0.0
        %2150 = vmatprep.subr.mxu0 0.0
        %2151 = vmatpush1.msra.mxu0 0.0
        %2152 = vmatprep.subr.mxu0 0.0
        %2153 = vmatpush1.msra.mxu0 0.0
        %2154 = vmatprep.subr.mxu0 0.0
        %2155 = vmatpush1.msra.mxu0 0.0
        %2156 = vmatprep.subr.mxu0 0.0
        %2157 = vmatpush1.msra.mxu0 0.0
        %2158 = vmatprep.subr.mxu0 0.0
        %2159 = vmatpush1.msra.mxu0 0.0
        %2160 = vmatprep.subr.mxu0 0.0
        %2161 = vmatpush1.msra.mxu0 0.0
        %2162 = vmatprep.subr.mxu0 0.0
        %2163 = vmatpush1.msra.mxu0 0.0
        %2164 = vmatprep.mubr.f32.mxu0 0.0
        %2165 = vmatmul.mubr.f32.gmra.mrb[0].mxu0 %v2095
        %v2166 = vpop.f32.mrb[0].mxu0
        %v2167 = vadd.f32 %v2092, %v2166
        %v2168 = vpop.f32.mrb[0].mxu0
        %2169 = vmatprep.mubr.f32.mxu0 0.0
        %2170 = vmatmul.mubr.f32.gmra.mrb[0].mxu0 %v2098
        %v2171 = vpop.f32.mrb[0].mxu0
        %v2172 = vadd.f32 %v2092, %v2171
        %v2173 = vpop.f32.mrb[0].mxu0
        %2174 = vdwg.mxu0
        %2175 = vst.msk [vmem:[%s271] sm:$0xff] %vm302, %v2167
        %2176 = vst.msk [vmem:[%s271 + $0x8] sm:$0xff] %vm302, %v2172
        %s2177 = sand.u32 %s141, 1
        %s2178 = scalar_lea.sflag [#allocation5], %s2177
        %s2179 = sand.u32 %s141, 1
        %s2180 = smul.addr %s2179, 16
        %s2181 = scalar_lea.vmem [#allocation9], %s2180
        // Predicated region
        $region53: #{tpu_custom_call.1} parent=39 // pred_check
          %p2182 = pneg %p151
        $region54: #{tpu_custom_call.1} parent=39 // pred_check_branch
          %2184 = sbr.rel (%p2182) target = $region56
        $region55: #{tpu_custom_call.1} parent=39 // pred_region
          %s2186 = ssub.s32 256, 256
          %2187 = vsyncadd %s2178, %s2186
          %s2188 = smul.addr %s23, 2
          %s2189 = smul.addr %s2188, 128
          %s2190 = scalar_lea.hbm %s5, %s2189
          %s2191 = sshll.u32 %s2181, 4
          %s2192 = int_to_ptr.vmem [resolvable:$true] %s2191
          %2197 = dma.vmem_to_hbm [thread:$0]  %s2192, 256, %s2190, %s2178, 128, 128, 8
        $region56: #{tpu_custom_call.1} parent=39 // pred_fallthru
          _
      $region40: #{tpu_custom_call.1} parent=5 // pred_fallthru
        _
      %p2198 = scmp.le.s32.totalorder 2, %s18
      // Predicated region
      $region57: #{tpu_custom_call.1} parent=5 // pred_check
        %p2199 = pneg %p2198
      $region58: #{tpu_custom_call.1} parent=5 // pred_check_branch
        %2201 = sbr.rel (%p2199) target = $region60
      $region59: #{tpu_custom_call.1} parent=5 // pred_region
        %s2202 = ssub.s32 %s18, 2
        // Predicated region
        $region61: #{tpu_custom_call.1} parent=59 // pred_check
          %p2203 = pneg %p157
        $region62: #{tpu_custom_call.1} parent=59 // pred_check_branch
          %2205 = sbr.rel (%p2203) target = $region64
        $region63: #{tpu_custom_call.1} parent=59 // pred_region
          %s2206 = sand.u32 %s142, 1
          %s2207 = scalar_lea.sflag [#allocation5], %s2206
          %s2208 = sand.u32 %s142, 1
          %s2209 = smul.addr %s2208, 16
          %s2210 = scalar_lea.vmem [#allocation9], %s2209
          %2211 = dma.done %s2207, 256
        $region64: #{tpu_custom_call.1} parent=59 // pred_fallthru
          _
      $region60: #{tpu_custom_call.1} parent=5 // pred_fallthru
        _
    $region6: #{tpu_custom_call.1} parent=1 // loop_footer
      %s22 = sadd.s32 1, %s18
    $region7: #{tpu_custom_call.1} parent=1 // loop_footer_branch
      %17 = sbr.rel target = $region3
    $region8: #{tpu_custom_call.1} parent=1 // loop_exit
      _
    %2212 = vsyncpa [#allocation4], 1
    %s2213 = scalar_lea.sflag [#allocation4], 1
    %2214 = vsyncpa %s2213, 1
    %2215 = vsyncpa [#allocation7], 1
    %2216 = vsyncpa [#allocation5], 1
    %s2217 = scalar_lea.sflag [#allocation5], 1
    %2218 = vsyncpa %s2217, 1

</llo_original>
